<compile_context>
chip_gen: v5e
topology: v5e:2x2
jax: 0.10.0
libtpu: 0.0.40
codegen_flags: <defaults>
</compile_context>

<pallas_src>
import numpy as np
import jax
import jax.numpy as jnp
from jax.experimental import pallas as pl
from jax.experimental.pallas import tpu as pltpu


def _char_lstm_kernel(tok_tm_ref, p_tm2bm_ref, emb_ref,
                      h0_ref, c0_ref, wih_ref, whh_ref, b_ref,
                      wfc_ref, bfc_ref,
                      y_ref, hn_ref, cn_ref,
                      x_scr, h_scr):
    B, H = h0_ref.shape
    V = emb_ref.shape[0]
    SB, O = y_ref.shape
    S = SB // B

    # ---- embedding fused in-kernel: one-hot @ table (tokens already time-major)
    tok = tok_tm_ref[...]                                           # (S*B, 1) int32
    onehot = (tok == jax.lax.broadcasted_iota(jnp.int32, (SB, V), 1)
              ).astype(jnp.float32)                                 # (S*B, V)
    x_scr[...] = jnp.dot(onehot, emb_ref[...],
                         preferred_element_type=jnp.float32)        # (S*B, H) time-major

    # ---- LSTM recurrence; weights/bias loaded once and kept in vregs ----
    wih = wih_ref[...]                                              # (H, 4H)
    whh = whh_ref[...]                                              # (H, 4H)
    bias = jnp.broadcast_to(b_ref[...], (B, 4 * H))                 # hoisted broadcast
    lane = jax.lax.broadcasted_iota(jnp.int32, (B, 4 * H), 1)
    g_mask = jnp.logical_and(lane >= 2 * H, lane < 3 * H)           # tanh (g) lanes

    def step(t, carry):
        h_prev, c_prev = carry
        x_t = x_scr[pl.ds(t * B, B), :]                             # (B, H), contiguous
        gates = (jnp.dot(x_t, wih, preferred_element_type=jnp.float32)
                 + jnp.dot(h_prev, whh, preferred_element_type=jnp.float32)
                 + bias)                                            # (B, 4H): i|f|g|o
        # Full-vreg sigmoid + tanh, then select the g-gate lanes.
        act = jnp.where(g_mask, jnp.tanh(gates), jax.nn.sigmoid(gates))
        i_g = act[:, 0 * H:1 * H]
        f_g = act[:, 1 * H:2 * H]
        g_g = act[:, 2 * H:3 * H]
        o_g = act[:, 3 * H:4 * H]
        c_new = f_g * c_prev + i_g * g_g
        h_new = o_g * jnp.tanh(c_new)
        h_scr[pl.ds(t * B, B), :] = h_new                           # time-major history
        return h_new, c_new

    h_last, c_last = jax.lax.fori_loop(
        0, S, step, (h0_ref[...], c0_ref[...]), unroll=True)
    hn_ref[...] = h_last
    cn_ref[...] = c_last

    # TODO(synk): nn.Dropout is identity in eval mode; training-mode dropout
    # (random mask via pltpu.prng_*) is intentionally not applied here.

    # ---- batched final projection, then reorder to batch-major in one store ----
    y_tm = (jnp.dot(h_scr[...], wfc_ref[...],
                    preferred_element_type=jnp.float32)
            + bfc_ref[...])                                         # (S*B, O) time-major
    y_ref[...] = jnp.dot(p_tm2bm_ref[...], y_tm,
                         preferred_element_type=jnp.float32
                         ).astype(y_ref.dtype)                      # (B*S, O) batch-major


def char_lstm_forward(tokens, hidden, params):
    """tokens: (B, S) int32; hidden: (h0, c0) each (n_layers=1, B, H)."""
    emb, w_ih, w_hh, b_ih, b_hh, w_fc, b_fc = (
        params["emb"], params["w_ih"], params["w_hh"],
        params["b_ih"], params["b_hh"], params["w_fc"], params["b_fc"])
    h0, c0 = hidden
    B, S = tokens.shape
    V, H = emb.shape
    O = w_fc.shape[0]
    SB = S * B

    # Layout prep (tiny metadata-sized ops only; no large-tensor transposes).
    tok_tm = tokens.T.reshape(SB, 1).astype(jnp.int32)     # time-major token column
    wih_t = w_ih.T                                         # (H, 4H)
    whh_t = w_hh.T                                         # (H, 4H)
    b = (b_ih + b_hh).reshape(1, 4 * H)                    # (1, 4H)
    wfc_t = w_fc.T                                         # (H, O)
    bfc = b_fc.reshape(1, O)                               # (1, O)
    h0_2d = h0[0]
    c0_2d = c0[0]

    # Constant time-major -> batch-major permutation (numpy, trace-time):
    # row i = b*S+t of (P_tm2bm @ v_tm) picks v_tm[t*B+b].
    idx = np.arange(SB)
    p_tm2bm = np.zeros((SB, SB), np.float32)
    p_tm2bm[idx, (idx % S) * B + idx // S] = 1.0
    p_tm2bm = jnp.asarray(p_tm2bm)

    y_flat, h_n, c_n = pl.pallas_call(
        _char_lstm_kernel,
        out_shape=(
            jax.ShapeDtypeStruct((SB, O), jnp.float32),
            jax.ShapeDtypeStruct((B, H), jnp.float32),
            jax.ShapeDtypeStruct((B, H), jnp.float32),
        ),
        grid_spec=pltpu.PrefetchScalarGridSpec(
            num_scalar_prefetch=0,
            grid=(1,),
            in_specs=[
                pl.BlockSpec((SB, 1), lambda i: (0, 0)),           # tokens (time-major)
                pl.BlockSpec((SB, SB), lambda i: (0, 0)),          # perm tm->bm
                pl.BlockSpec((V, H), lambda i: (0, 0)),            # embedding table
                pl.BlockSpec((B, H), lambda i: (0, 0)),            # h0
                pl.BlockSpec((B, H), lambda i: (0, 0)),            # c0
                pl.BlockSpec((H, 4 * H), lambda i: (0, 0)),        # W_ih^T
                pl.BlockSpec((H, 4 * H), lambda i: (0, 0)),        # W_hh^T
                pl.BlockSpec((1, 4 * H), lambda i: (0, 0)),        # b_ih + b_hh
                pl.BlockSpec((H, O), lambda i: (0, 0)),            # W_fc^T
                pl.BlockSpec((1, O), lambda i: (0, 0)),            # b_fc
            ],
            out_specs=(
                pl.BlockSpec((SB, O), lambda i: (0, 0)),           # y (batch-major flat)
                pl.BlockSpec((B, H), lambda i: (0, 0)),            # h_n
                pl.BlockSpec((B, H), lambda i: (0, 0)),            # c_n
            ),
            scratch_shapes=[
                pltpu.VMEM((SB, H), jnp.float32),                  # x (time-major)
                pltpu.VMEM((SB, H), jnp.float32),                  # h history (time-major)
            ],
        ),
        compiler_params=pltpu.CompilerParams(
            dimension_semantics=("arbitrary",)),
    )(tok_tm, p_tm2bm, emb, h0_2d, c0_2d,
      wih_t, whh_t, b, wfc_t, bfc)

    y = y_flat.reshape(B, S, O)                            # free reshape
    return y, (h_n[None], c_n[None])


def _reference_forward(tokens, hidden, params):
    """Pure-JAX reference of the PyTorch forward (eval-mode dropout)."""
    emb, w_ih, w_hh, b_ih, b_hh, w_fc, b_fc = (
        params["emb"], params["w_ih"], params["w_hh"],
        params["b_ih"], params["b_hh"], params["w_fc"], params["b_fc"])
    h, c = hidden[0][0], hidden[1][0]
    x = jnp.take(emb, tokens, axis=0)                      # (B, S, H)
    H = emb.shape[1]
    ys = []
    for t in range(tokens.shape[1]):
        g = x[:, t, :] @ w_ih.T + b_ih + h @ w_hh.T + b_hh
        i = jax.nn.sigmoid(g[:, 0 * H:1 * H])
        f = jax.nn.sigmoid(g[:, 1 * H:2 * H])
        gg = jnp.tanh(g[:, 2 * H:3 * H])
        o = jax.nn.sigmoid(g[:, 3 * H:4 * H])
        c = f * c + i * gg
        h = o * jnp.tanh(c)
        ys.append(h @ w_fc.T + b_fc)
    return jnp.stack(ys, axis=1), (h[None], c[None])


if __name__ == "__main__":
    input_size = 16    # vocab
    hidden_size = 32
    output_size = 16
    n_layers = 1
    batch = 2
    seq = 8

    key = jax.random.PRNGKey(0)
    ks = jax.random.split(key, 8)
    scale = 1.0 / jnp.sqrt(hidden_size)
    params = {
        "emb":  jax.random.normal(ks[0], (input_size, hidden_size), jnp.float32) * 0.1,
        "w_ih": jax.random.uniform(ks[1], (4 * hidden_size, hidden_size),
                                   jnp.float32, -scale, scale),
        "w_hh": jax.random.uniform(ks[2], (4 * hidden_size, hidden_size),
                                   jnp.float32, -scale, scale),
        "b_ih": jax.random.uniform(ks[3], (4 * hidden_size,), jnp.float32, -scale, scale),
        "b_hh": jax.random.uniform(ks[4], (4 * hidden_size,), jnp.float32, -scale, scale),
        "w_fc": jax.random.uniform(ks[5], (output_size, hidden_size),
                                   jnp.float32, -scale, scale),
        "b_fc": jax.random.uniform(ks[6], (output_size,), jnp.float32, -scale, scale),
    }

    tokens = jax.random.randint(ks[7], (batch, seq), 0, input_size, dtype=jnp.int32)
    hidden0 = (jnp.zeros((n_layers, batch, hidden_size), jnp.float32),
               jnp.zeros((n_layers, batch, hidden_size), jnp.float32))

    y, (h_n, c_n) = char_lstm_forward(tokens, hidden0, params)
    jax.block_until_ready((y, h_n, c_n))

    y_ref, (h_ref, c_ref) = _reference_forward(tokens, hidden0, params)
    assert jnp.allclose(y, y_ref, atol=2e-5), "output mismatch"
    assert jnp.allclose(h_n, h_ref, atol=2e-5), "hidden mismatch"
    assert jnp.allclose(c_n, c_ref, atol=2e-5), "cell mismatch"

    print("KERNEL_OK")
</pallas_src>

<mosaic_0001>
module attributes {stable_mosaic.version = 11 : i64} {
  func.func @_char_lstm_kernel(%arg0: i32, %arg1: memref<16x1xi32, #tpu.memory_space<vmem>>, %arg2: memref<16x16xf32, #tpu.memory_space<vmem>>, %arg3: memref<16x32xf32, #tpu.memory_space<vmem>>, %arg4: memref<2x32xf32, #tpu.memory_space<vmem>>, %arg5: memref<2x32xf32, #tpu.memory_space<vmem>>, %arg6: memref<32x128xf32, #tpu.memory_space<vmem>>, %arg7: memref<32x128xf32, #tpu.memory_space<vmem>>, %arg8: memref<1x128xf32, #tpu.memory_space<vmem>>, %arg9: memref<32x16xf32, #tpu.memory_space<vmem>>, %arg10: memref<1x16xf32, #tpu.memory_space<vmem>>, %arg11: memref<16x16xf32, #tpu.memory_space<vmem>>, %arg12: memref<2x32xf32, #tpu.memory_space<vmem>>, %arg13: memref<2x32xf32, #tpu.memory_space<vmem>>, %arg14: memref<16x32xf32, #tpu.memory_space<vmem>>, %arg15: memref<16x32xf32, #tpu.memory_space<vmem>>) attributes {dimension_semantics = [#tpu.dimension_semantics<arbitrary>], iteration_bounds = array<i64: 1>, scalar_prefetch = 0 : i64, scratch_operands = 2 : i64, tpu.core_type = #tpu.core_type<tc>, window_params = [{pipeline_mode = #tpu.pipeline_mode<synchronous>, transform_indices = @transform_0, window_bounds = array<i64: 16, 1>}, {pipeline_mode = #tpu.pipeline_mode<synchronous>, transform_indices = @transform_1, window_bounds = array<i64: 16, 16>}, {pipeline_mode = #tpu.pipeline_mode<synchronous>, transform_indices = @transform_2, window_bounds = array<i64: 16, 32>}, {pipeline_mode = #tpu.pipeline_mode<synchronous>, transform_indices = @transform_3, window_bounds = array<i64: 2, 32>}, {pipeline_mode = #tpu.pipeline_mode<synchronous>, transform_indices = @transform_4, window_bounds = array<i64: 2, 32>}, {pipeline_mode = #tpu.pipeline_mode<synchronous>, transform_indices = @transform_5, window_bounds = array<i64: 32, 128>}, {pipeline_mode = #tpu.pipeline_mode<synchronous>, transform_indices = @transform_6, window_bounds = array<i64: 32, 128>}, {pipeline_mode = #tpu.pipeline_mode<synchronous>, transform_indices = @transform_7, window_bounds = array<i64: 1, 128>}, {pipeline_mode = #tpu.pipeline_mode<synchronous>, transform_indices = @transform_8, window_bounds = array<i64: 32, 16>}, {pipeline_mode = #tpu.pipeline_mode<synchronous>, transform_indices = @transform_9, window_bounds = array<i64: 1, 16>}, {pipeline_mode = #tpu.pipeline_mode<synchronous>, transform_indices = @transform_10, window_bounds = array<i64: 16, 16>}, {pipeline_mode = #tpu.pipeline_mode<synchronous>, transform_indices = @transform_11, window_bounds = array<i64: 2, 32>}, {pipeline_mode = #tpu.pipeline_mode<synchronous>, transform_indices = @transform_12, window_bounds = array<i64: 2, 32>}]} {
    %c0 = arith.constant 0 : index
    %c0_0 = arith.constant 0 : index
    %0 = vector.load %arg1[%c0, %c0_0] : memref<16x1xi32, #tpu.memory_space<vmem>>, vector<16x1xi32>
    %1 = tpu.iota {dimensions = array<i32: 1>} : vector<16x16xi32>
    %2 = vector.broadcast %0 : vector<16x1xi32> to vector<16x16xi32>
    %3 = arith.cmpi eq, %2, %1 : vector<16x16xi32>
    %4 = arith.extui %3 : vector<16x16xi1> to vector<16x16xi32>
    %5 = arith.sitofp %4 : vector<16x16xi32> to vector<16x16xf32>
    %c0_1 = arith.constant 0 : index
    %c0_2 = arith.constant 0 : index
    %6 = vector.load %arg3[%c0_1, %c0_2] : memref<16x32xf32, #tpu.memory_space<vmem>>, vector<16x32xf32>
    %cst = arith.constant dense<0.000000e+00> : vector<16x32xf32>
    %7 = tpu.matmul %5, %6, %cst {dimension_numbers = #tpu.dot_dimension_numbers<[1], [0], [0], [1], [0, 0, 1, 1], [], []>} : vector<16x16xf32>, vector<16x32xf32>, vector<16x32xf32> -> vector<16x32xf32>
    %c0_3 = arith.constant 0 : index
    %c0_4 = arith.constant 0 : index
    %8 = vector.load %arg14[%c0_3, %c0_4] : memref<16x32xf32, #tpu.memory_space<vmem>>, vector<16x32xf32>
    tpu.vector_store %arg14[%c0_3, %c0_4], %7 {strides = array<i32>} : memref<16x32xf32, #tpu.memory_space<vmem>>, vector<16x32xf32>,
    %c0_5 = arith.constant 0 : index
    %c0_6 = arith.constant 0 : index
    %9 = vector.load %arg6[%c0_5, %c0_6] : memref<32x128xf32, #tpu.memory_space<vmem>>, vector<32x128xf32>
    %c0_7 = arith.constant 0 : index
    %c0_8 = arith.constant 0 : index
    %10 = vector.load %arg7[%c0_7, %c0_8] : memref<32x128xf32, #tpu.memory_space<vmem>>, vector<32x128xf32>
    %c0_9 = arith.constant 0 : index
    %c0_10 = arith.constant 0 : index
    %11 = vector.load %arg8[%c0_9, %c0_10] : memref<1x128xf32, #tpu.memory_space<vmem>>, vector<1x128xf32>
    %12 = vector.shape_cast %11 : vector<1x128xf32> to vector<1x128xf32>
    %13 = vector.broadcast %12 : vector<1x128xf32> to vector<2x128xf32>
    %14 = tpu.iota {dimensions = array<i32: 1>} : vector<2x128xi32>
    %c64_i32 = arith.constant 64 : i32
    %15 = vector.broadcast %c64_i32 : i32 to vector<2x128xi32>
    %16 = arith.cmpi sge, %14, %15 : vector<2x128xi32>
    %c96_i32 = arith.constant 96 : i32
    %17 = vector.broadcast %c96_i32 : i32 to vector<2x128xi32>
    %18 = arith.cmpi slt, %14, %17 : vector<2x128xi32>
    %19 = arith.andi %16, %18 : vector<2x128xi1>
    %c0_11 = arith.constant 0 : index
    %c0_12 = arith.constant 0 : index
    %20 = vector.load %arg4[%c0_11, %c0_12] : memref<2x32xf32, #tpu.memory_space<vmem>>, vector<2x32xf32>
    %c0_13 = arith.constant 0 : index
    %c0_14 = arith.constant 0 : index
    %21 = vector.load %arg5[%c0_13, %c0_14] : memref<2x32xf32, #tpu.memory_space<vmem>>, vector<2x32xf32>
    %c0_i32 = arith.constant 0 : i32
    %c2_i32 = arith.constant 2 : i32
    %22 = arith.muli %c0_i32, %c2_i32 : i32
    %23 = arith.index_cast %22 : i32 to index
    %c0_15 = arith.constant 0 : index
    %24 = vector.load %arg14[%23, %c0_15] : memref<16x32xf32, #tpu.memory_space<vmem>>, vector<2x32xf32>
    %cst_16 = arith.constant dense<0.000000e+00> : vector<2x128xf32>
    %25 = tpu.matmul %24, %9, %cst_16 {dimension_numbers = #tpu.dot_dimension_numbers<[1], [0], [0], [1], [0, 0, 1, 1], [], []>} : vector<2x32xf32>, vector<32x128xf32>, vector<2x128xf32> -> vector<2x128xf32>
    %cst_17 = arith.constant dense<0.000000e+00> : vector<2x128xf32>
    %26 = tpu.matmul %20, %10, %cst_17 {dimension_numbers = #tpu.dot_dimension_numbers<[1], [0], [0], [1], [0, 0, 1, 1], [], []>} : vector<2x32xf32>, vector<32x128xf32>, vector<2x128xf32> -> vector<2x128xf32>
    %27 = arith.addf %25, %26 : vector<2x128xf32>
    %28 = arith.addf %27, %13 : vector<2x128xf32>
    %29 = math.tanh %28 : vector<2x128xf32>
    %30 = arith.negf %28 : vector<2x128xf32>
    %31 = math.exp %30 : vector<2x128xf32>
    %cst_18 = arith.constant 1.000000e+00 : f32
    %32 = vector.broadcast %cst_18 : f32 to vector<2x128xf32>
    %33 = arith.addf %32, %31 : vector<2x128xf32>
    %34 = arith.divf %32, %33 : vector<2x128xf32>
    %35 = arith.select %19, %29, %34 : vector<2x128xi1>, vector<2x128xf32>
    %36 = vector.extract_strided_slice %35 {offsets = [0, 0], sizes = [2, 32], strides = [1, 1]} : vector<2x128xf32> to vector<2x32xf32>
    %37 = vector.extract_strided_slice %35 {offsets = [0, 32], sizes = [2, 32], strides = [1, 1]} : vector<2x128xf32> to vector<2x32xf32>
    %38 = vector.extract_strided_slice %35 {offsets = [0, 64], sizes = [2, 32], strides = [1, 1]} : vector<2x128xf32> to vector<2x32xf32>
    %39 = vector.extract_strided_slice %35 {offsets = [0, 96], sizes = [2, 32], strides = [1, 1]} : vector<2x128xf32> to vector<2x32xf32>
    %40 = arith.mulf %37, %21 : vector<2x32xf32>
    %41 = arith.mulf %36, %38 : vector<2x32xf32>
    %42 = arith.addf %40, %41 : vector<2x32xf32>
    %43 = math.tanh %42 : vector<2x32xf32>
    %44 = arith.mulf %39, %43 : vector<2x32xf32>
    %c2_i32_19 = arith.constant 2 : i32
    %45 = arith.muli %c0_i32, %c2_i32_19 : i32
    %46 = arith.index_cast %45 : i32 to index
    %c0_20 = arith.constant 0 : index
    %47 = vector.load %arg15[%46, %c0_20] : memref<16x32xf32, #tpu.memory_space<vmem>>, vector<2x32xf32>
    tpu.vector_store %arg15[%46, %c0_20], %44 {strides = array<i32>} : memref<16x32xf32, #tpu.memory_space<vmem>>, vector<2x32xf32>,
    %c1_i32 = arith.constant 1 : i32
    %c2_i32_21 = arith.constant 2 : i32
    %48 = arith.muli %c1_i32, %c2_i32_21 : i32
    %49 = arith.index_cast %48 : i32 to index
    %c0_22 = arith.constant 0 : index
    %50 = vector.load %arg14[%49, %c0_22] : memref<16x32xf32, #tpu.memory_space<vmem>>, vector<2x32xf32>
    %cst_23 = arith.constant dense<0.000000e+00> : vector<2x128xf32>
    %51 = tpu.matmul %50, %9, %cst_23 {dimension_numbers = #tpu.dot_dimension_numbers<[1], [0], [0], [1], [0, 0, 1, 1], [], []>} : vector<2x32xf32>, vector<32x128xf32>, vector<2x128xf32> -> vector<2x128xf32>
    %cst_24 = arith.constant dense<0.000000e+00> : vector<2x128xf32>
    %52 = tpu.matmul %44, %10, %cst_24 {dimension_numbers = #tpu.dot_dimension_numbers<[1], [0], [0], [1], [0, 0, 1, 1], [], []>} : vector<2x32xf32>, vector<32x128xf32>, vector<2x128xf32> -> vector<2x128xf32>
    %53 = arith.addf %51, %52 : vector<2x128xf32>
    %54 = arith.addf %53, %13 : vector<2x128xf32>
    %55 = math.tanh %54 : vector<2x128xf32>
    %56 = arith.negf %54 : vector<2x128xf32>
    %57 = math.exp %56 : vector<2x128xf32>
    %cst_25 = arith.constant 1.000000e+00 : f32
    %58 = vector.broadcast %cst_25 : f32 to vector<2x128xf32>
    %59 = arith.addf %58, %57 : vector<2x128xf32>
    %60 = arith.divf %58, %59 : vector<2x128xf32>
    %61 = arith.select %19, %55, %60 : vector<2x128xi1>, vector<2x128xf32>
    %62 = vector.extract_strided_slice %61 {offsets = [0, 0], sizes = [2, 32], strides = [1, 1]} : vector<2x128xf32> to vector<2x32xf32>
    %63 = vector.extract_strided_slice %61 {offsets = [0, 32], sizes = [2, 32], strides = [1, 1]} : vector<2x128xf32> to vector<2x32xf32>
    %64 = vector.extract_strided_slice %61 {offsets = [0, 64], sizes = [2, 32], strides = [1, 1]} : vector<2x128xf32> to vector<2x32xf32>
    %65 = vector.extract_strided_slice %61 {offsets = [0, 96], sizes = [2, 32], strides = [1, 1]} : vector<2x128xf32> to vector<2x32xf32>
    %66 = arith.mulf %63, %42 : vector<2x32xf32>
    %67 = arith.mulf %62, %64 : vector<2x32xf32>
    %68 = arith.addf %66, %67 : vector<2x32xf32>
    %69 = math.tanh %68 : vector<2x32xf32>
    %70 = arith.mulf %65, %69 : vector<2x32xf32>
    %c2_i32_26 = arith.constant 2 : i32
    %71 = arith.muli %c1_i32, %c2_i32_26 : i32
    %72 = arith.index_cast %71 : i32 to index
    %c0_27 = arith.constant 0 : index
    %73 = vector.load %arg15[%72, %c0_27] : memref<16x32xf32, #tpu.memory_space<vmem>>, vector<2x32xf32>
    tpu.vector_store %arg15[%72, %c0_27], %70 {strides = array<i32>} : memref<16x32xf32, #tpu.memory_space<vmem>>, vector<2x32xf32>,
    %c2_i32_28 = arith.constant 2 : i32
    %c2_i32_29 = arith.constant 2 : i32
    %74 = arith.muli %c2_i32_28, %c2_i32_29 : i32
    %75 = arith.index_cast %74 : i32 to index
    %c0_30 = arith.constant 0 : index
    %76 = vector.load %arg14[%75, %c0_30] : memref<16x32xf32, #tpu.memory_space<vmem>>, vector<2x32xf32>
    %cst_31 = arith.constant dense<0.000000e+00> : vector<2x128xf32>
    %77 = tpu.matmul %76, %9, %cst_31 {dimension_numbers = #tpu.dot_dimension_numbers<[1], [0], [0], [1], [0, 0, 1, 1], [], []>} : vector<2x32xf32>, vector<32x128xf32>, vector<2x128xf32> -> vector<2x128xf32>
    %cst_32 = arith.constant dense<0.000000e+00> : vector<2x128xf32>
    %78 = tpu.matmul %70, %10, %cst_32 {dimension_numbers = #tpu.dot_dimension_numbers<[1], [0], [0], [1], [0, 0, 1, 1], [], []>} : vector<2x32xf32>, vector<32x128xf32>, vector<2x128xf32> -> vector<2x128xf32>
    %79 = arith.addf %77, %78 : vector<2x128xf32>
    %80 = arith.addf %79, %13 : vector<2x128xf32>
    %81 = math.tanh %80 : vector<2x128xf32>
    %82 = arith.negf %80 : vector<2x128xf32>
    %83 = math.exp %82 : vector<2x128xf32>
    %cst_33 = arith.constant 1.000000e+00 : f32
    %84 = vector.broadcast %cst_33 : f32 to vector<2x128xf32>
    %85 = arith.addf %84, %83 : vector<2x128xf32>
    %86 = arith.divf %84, %85 : vector<2x128xf32>
    %87 = arith.select %19, %81, %86 : vector<2x128xi1>, vector<2x128xf32>
    %88 = vector.extract_strided_slice %87 {offsets = [0, 0], sizes = [2, 32], strides = [1, 1]} : vector<2x128xf32> to vector<2x32xf32>
    %89 = vector.extract_strided_slice %87 {offsets = [0, 32], sizes = [2, 32], strides = [1, 1]} : vector<2x128xf32> to vector<2x32xf32>
    %90 = vector.extract_strided_slice %87 {offsets = [0, 64], sizes = [2, 32], strides = [1, 1]} : vector<2x128xf32> to vector<2x32xf32>
    %91 = vector.extract_strided_slice %87 {offsets = [0, 96], sizes = [2, 32], strides = [1, 1]} : vector<2x128xf32> to vector<2x32xf32>
    %92 = arith.mulf %89, %68 : vector<2x32xf32>
    %93 = arith.mulf %88, %90 : vector<2x32xf32>
    %94 = arith.addf %92, %93 : vector<2x32xf32>
    %95 = math.tanh %94 : vector<2x32xf32>
    %96 = arith.mulf %91, %95 : vector<2x32xf32>
    %c2_i32_34 = arith.constant 2 : i32
    %97 = arith.muli %c2_i32_28, %c2_i32_34 : i32
    %98 = arith.index_cast %97 : i32 to index
    %c0_35 = arith.constant 0 : index
    %99 = vector.load %arg15[%98, %c0_35] : memref<16x32xf32, #tpu.memory_space<vmem>>, vector<2x32xf32>
    tpu.vector_store %arg15[%98, %c0_35], %96 {strides = array<i32>} : memref<16x32xf32, #tpu.memory_space<vmem>>, vector<2x32xf32>,
    %c3_i32 = arith.constant 3 : i32
    %c2_i32_36 = arith.constant 2 : i32
    %100 = arith.muli %c3_i32, %c2_i32_36 : i32
    %101 = arith.index_cast %100 : i32 to index
    %c0_37 = arith.constant 0 : index
    %102 = vector.load %arg14[%101, %c0_37] : memref<16x32xf32, #tpu.memory_space<vmem>>, vector<2x32xf32>
    %cst_38 = arith.constant dense<0.000000e+00> : vector<2x128xf32>
    %103 = tpu.matmul %102, %9, %cst_38 {dimension_numbers = #tpu.dot_dimension_numbers<[1], [0], [0], [1], [0, 0, 1, 1], [], []>} : vector<2x32xf32>, vector<32x128xf32>, vector<2x128xf32> -> vector<2x128xf32>
    %cst_39 = arith.constant dense<0.000000e+00> : vector<2x128xf32>
    %104 = tpu.matmul %96, %10, %cst_39 {dimension_numbers = #tpu.dot_dimension_numbers<[1], [0], [0], [1], [0, 0, 1, 1], [], []>} : vector<2x32xf32>, vector<32x128xf32>, vector<2x128xf32> -> vector<2x128xf32>
    %105 = arith.addf %103, %104 : vector<2x128xf32>
    %106 = arith.addf %105, %13 : vector<2x128xf32>
    %107 = math.tanh %106 : vector<2x128xf32>
    %108 = arith.negf %106 : vector<2x128xf32>
    %109 = math.exp %108 : vector<2x128xf32>
    %cst_40 = arith.constant 1.000000e+00 : f32
    %110 = vector.broadcast %cst_40 : f32 to vector<2x128xf32>
    %111 = arith.addf %110, %109 : vector<2x128xf32>
    %112 = arith.divf %110, %111 : vector<2x128xf32>
    %113 = arith.select %19, %107, %112 : vector<2x128xi1>, vector<2x128xf32>
    %114 = vector.extract_strided_slice %113 {offsets = [0, 0], sizes = [2, 32], strides = [1, 1]} : vector<2x128xf32> to vector<2x32xf32>
    %115 = vector.extract_strided_slice %113 {offsets = [0, 32], sizes = [2, 32], strides = [1, 1]} : vector<2x128xf32> to vector<2x32xf32>
    %116 = vector.extract_strided_slice %113 {offsets = [0, 64], sizes = [2, 32], strides = [1, 1]} : vector<2x128xf32> to vector<2x32xf32>
    %117 = vector.extract_strided_slice %113 {offsets = [0, 96], sizes = [2, 32], strides = [1, 1]} : vector<2x128xf32> to vector<2x32xf32>
    %118 = arith.mulf %115, %94 : vector<2x32xf32>
    %119 = arith.mulf %114, %116 : vector<2x32xf32>
    %120 = arith.addf %118, %119 : vector<2x32xf32>
    %121 = math.tanh %120 : vector<2x32xf32>
    %122 = arith.mulf %117, %121 : vector<2x32xf32>
    %c2_i32_41 = arith.constant 2 : i32
    %123 = arith.muli %c3_i32, %c2_i32_41 : i32
    %124 = arith.index_cast %123 : i32 to index
    %c0_42 = arith.constant 0 : index
    %125 = vector.load %arg15[%124, %c0_42] : memref<16x32xf32, #tpu.memory_space<vmem>>, vector<2x32xf32>
    tpu.vector_store %arg15[%124, %c0_42], %122 {strides = array<i32>} : memref<16x32xf32, #tpu.memory_space<vmem>>, vector<2x32xf32>,
    %c4_i32 = arith.constant 4 : i32
    %c2_i32_43 = arith.constant 2 : i32
    %126 = arith.muli %c4_i32, %c2_i32_43 : i32
    %127 = arith.index_cast %126 : i32 to index
    %c0_44 = arith.constant 0 : index
    %128 = vector.load %arg14[%127, %c0_44] : memref<16x32xf32, #tpu.memory_space<vmem>>, vector<2x32xf32>
    %cst_45 = arith.constant dense<0.000000e+00> : vector<2x128xf32>
    %129 = tpu.matmul %128, %9, %cst_45 {dimension_numbers = #tpu.dot_dimension_numbers<[1], [0], [0], [1], [0, 0, 1, 1], [], []>} : vector<2x32xf32>, vector<32x128xf32>, vector<2x128xf32> -> vector<2x128xf32>
    %cst_46 = arith.constant dense<0.000000e+00> : vector<2x128xf32>
    %130 = tpu.matmul %122, %10, %cst_46 {dimension_numbers = #tpu.dot_dimension_numbers<[1], [0], [0], [1], [0, 0, 1, 1], [], []>} : vector<2x32xf32>, vector<32x128xf32>, vector<2x128xf32> -> vector<2x128xf32>
    %131 = arith.addf %129, %130 : vector<2x128xf32>
    %132 = arith.addf %131, %13 : vector<2x128xf32>
    %133 = math.tanh %132 : vector<2x128xf32>
    %134 = arith.negf %132 : vector<2x128xf32>
    %135 = math.exp %134 : vector<2x128xf32>
    %cst_47 = arith.constant 1.000000e+00 : f32
    %136 = vector.broadcast %cst_47 : f32 to vector<2x128xf32>
    %137 = arith.addf %136, %135 : vector<2x128xf32>
    %138 = arith.divf %136, %137 : vector<2x128xf32>
    %139 = arith.select %19, %133, %138 : vector<2x128xi1>, vector<2x128xf32>
    %140 = vector.extract_strided_slice %139 {offsets = [0, 0], sizes = [2, 32], strides = [1, 1]} : vector<2x128xf32> to vector<2x32xf32>
    %141 = vector.extract_strided_slice %139 {offsets = [0, 32], sizes = [2, 32], strides = [1, 1]} : vector<2x128xf32> to vector<2x32xf32>
    %142 = vector.extract_strided_slice %139 {offsets = [0, 64], sizes = [2, 32], strides = [1, 1]} : vector<2x128xf32> to vector<2x32xf32>
    %143 = vector.extract_strided_slice %139 {offsets = [0, 96], sizes = [2, 32], strides = [1, 1]} : vector<2x128xf32> to vector<2x32xf32>
    %144 = arith.mulf %141, %120 : vector<2x32xf32>
    %145 = arith.mulf %140, %142 : vector<2x32xf32>
    %146 = arith.addf %144, %145 : vector<2x32xf32>
    %147 = math.tanh %146 : vector<2x32xf32>
    %148 = arith.mulf %143, %147 : vector<2x32xf32>
    %c2_i32_48 = arith.constant 2 : i32
    %149 = arith.muli %c4_i32, %c2_i32_48 : i32
    %150 = arith.index_cast %149 : i32 to index
    %c0_49 = arith.constant 0 : index
    %151 = vector.load %arg15[%150, %c0_49] : memref<16x32xf32, #tpu.memory_space<vmem>>, vector<2x32xf32>
    tpu.vector_store %arg15[%150, %c0_49], %148 {strides = array<i32>} : memref<16x32xf32, #tpu.memory_space<vmem>>, vector<2x32xf32>,
    %c5_i32 = arith.constant 5 : i32
    %c2_i32_50 = arith.constant 2 : i32
    %152 = arith.muli %c5_i32, %c2_i32_50 : i32
    %153 = arith.index_cast %152 : i32 to index
    %c0_51 = arith.constant 0 : index
    %154 = vector.load %arg14[%153, %c0_51] : memref<16x32xf32, #tpu.memory_space<vmem>>, vector<2x32xf32>
    %cst_52 = arith.constant dense<0.000000e+00> : vector<2x128xf32>
    %155 = tpu.matmul %154, %9, %cst_52 {dimension_numbers = #tpu.dot_dimension_numbers<[1], [0], [0], [1], [0, 0, 1, 1], [], []>} : vector<2x32xf32>, vector<32x128xf32>, vector<2x128xf32> -> vector<2x128xf32>
    %cst_53 = arith.constant dense<0.000000e+00> : vector<2x128xf32>
    %156 = tpu.matmul %148, %10, %cst_53 {dimension_numbers = #tpu.dot_dimension_numbers<[1], [0], [0], [1], [0, 0, 1, 1], [], []>} : vector<2x32xf32>, vector<32x128xf32>, vector<2x128xf32> -> vector<2x128xf32>
    %157 = arith.addf %155, %156 : vector<2x128xf32>
    %158 = arith.addf %157, %13 : vector<2x128xf32>
    %159 = math.tanh %158 : vector<2x128xf32>
    %160 = arith.negf %158 : vector<2x128xf32>
    %161 = math.exp %160 : vector<2x128xf32>
    %cst_54 = arith.constant 1.000000e+00 : f32
    %162 = vector.broadcast %cst_54 : f32 to vector<2x128xf32>
    %163 = arith.addf %162, %161 : vector<2x128xf32>
    %164 = arith.divf %162, %163 : vector<2x128xf32>
    %165 = arith.select %19, %159, %164 : vector<2x128xi1>, vector<2x128xf32>
    %166 = vector.extract_strided_slice %165 {offsets = [0, 0], sizes = [2, 32], strides = [1, 1]} : vector<2x128xf32> to vector<2x32xf32>
    %167 = vector.extract_strided_slice %165 {offsets = [0, 32], sizes = [2, 32], strides = [1, 1]} : vector<2x128xf32> to vector<2x32xf32>
    %168 = vector.extract_strided_slice %165 {offsets = [0, 64], sizes = [2, 32], strides = [1, 1]} : vector<2x128xf32> to vector<2x32xf32>
    %169 = vector.extract_strided_slice %165 {offsets = [0, 96], sizes = [2, 32], strides = [1, 1]} : vector<2x128xf32> to vector<2x32xf32>
    %170 = arith.mulf %167, %146 : vector<2x32xf32>
    %171 = arith.mulf %166, %168 : vector<2x32xf32>
    %172 = arith.addf %170, %171 : vector<2x32xf32>
    %173 = math.tanh %172 : vector<2x32xf32>
    %174 = arith.mulf %169, %173 : vector<2x32xf32>
    %c2_i32_55 = arith.constant 2 : i32
    %175 = arith.muli %c5_i32, %c2_i32_55 : i32
    %176 = arith.index_cast %175 : i32 to index
    %c0_56 = arith.constant 0 : index
    %177 = vector.load %arg15[%176, %c0_56] : memref<16x32xf32, #tpu.memory_space<vmem>>, vector<2x32xf32>
    tpu.vector_store %arg15[%176, %c0_56], %174 {strides = array<i32>} : memref<16x32xf32, #tpu.memory_space<vmem>>, vector<2x32xf32>,
    %c6_i32 = arith.constant 6 : i32
    %c2_i32_57 = arith.constant 2 : i32
    %178 = arith.muli %c6_i32, %c2_i32_57 : i32
    %179 = arith.index_cast %178 : i32 to index
    %c0_58 = arith.constant 0 : index
    %180 = vector.load %arg14[%179, %c0_58] : memref<16x32xf32, #tpu.memory_space<vmem>>, vector<2x32xf32>
    %cst_59 = arith.constant dense<0.000000e+00> : vector<2x128xf32>
    %181 = tpu.matmul %180, %9, %cst_59 {dimension_numbers = #tpu.dot_dimension_numbers<[1], [0], [0], [1], [0, 0, 1, 1], [], []>} : vector<2x32xf32>, vector<32x128xf32>, vector<2x128xf32> -> vector<2x128xf32>
    %cst_60 = arith.constant dense<0.000000e+00> : vector<2x128xf32>
    %182 = tpu.matmul %174, %10, %cst_60 {dimension_numbers = #tpu.dot_dimension_numbers<[1], [0], [0], [1], [0, 0, 1, 1], [], []>} : vector<2x32xf32>, vector<32x128xf32>, vector<2x128xf32> -> vector<2x128xf32>
    %183 = arith.addf %181, %182 : vector<2x128xf32>
    %184 = arith.addf %183, %13 : vector<2x128xf32>
    %185 = math.tanh %184 : vector<2x128xf32>
    %186 = arith.negf %184 : vector<2x128xf32>
    %187 = math.exp %186 : vector<2x128xf32>
    %cst_61 = arith.constant 1.000000e+00 : f32
    %188 = vector.broadcast %cst_61 : f32 to vector<2x128xf32>
    %189 = arith.addf %188, %187 : vector<2x128xf32>
    %190 = arith.divf %188, %189 : vector<2x128xf32>
    %191 = arith.select %19, %185, %190 : vector<2x128xi1>, vector<2x128xf32>
    %192 = vector.extract_strided_slice %191 {offsets = [0, 0], sizes = [2, 32], strides = [1, 1]} : vector<2x128xf32> to vector<2x32xf32>
    %193 = vector.extract_strided_slice %191 {offsets = [0, 32], sizes = [2, 32], strides = [1, 1]} : vector<2x128xf32> to vector<2x32xf32>
    %194 = vector.extract_strided_slice %191 {offsets = [0, 64], sizes = [2, 32], strides = [1, 1]} : vector<2x128xf32> to vector<2x32xf32>
    %195 = vector.extract_strided_slice %191 {offsets = [0, 96], sizes = [2, 32], strides = [1, 1]} : vector<2x128xf32> to vector<2x32xf32>
    %196 = arith.mulf %193, %172 : vector<2x32xf32>
    %197 = arith.mulf %192, %194 : vector<2x32xf32>
    %198 = arith.addf %196, %197 : vector<2x32xf32>
    %199 = math.tanh %198 : vector<2x32xf32>
    %200 = arith.mulf %195, %199 : vector<2x32xf32>
    %c2_i32_62 = arith.constant 2 : i32
    %201 = arith.muli %c6_i32, %c2_i32_62 : i32
    %202 = arith.index_cast %201 : i32 to index
    %c0_63 = arith.constant 0 : index
    %203 = vector.load %arg15[%202, %c0_63] : memref<16x32xf32, #tpu.memory_space<vmem>>, vector<2x32xf32>
    tpu.vector_store %arg15[%202, %c0_63], %200 {strides = array<i32>} : memref<16x32xf32, #tpu.memory_space<vmem>>, vector<2x32xf32>,
    %c7_i32 = arith.constant 7 : i32
    %c2_i32_64 = arith.constant 2 : i32
    %204 = arith.muli %c7_i32, %c2_i32_64 : i32
    %205 = arith.index_cast %204 : i32 to index
    %c0_65 = arith.constant 0 : index
    %206 = vector.load %arg14[%205, %c0_65] : memref<16x32xf32, #tpu.memory_space<vmem>>, vector<2x32xf32>
    %cst_66 = arith.constant dense<0.000000e+00> : vector<2x128xf32>
    %207 = tpu.matmul %206, %9, %cst_66 {dimension_numbers = #tpu.dot_dimension_numbers<[1], [0], [0], [1], [0, 0, 1, 1], [], []>} : vector<2x32xf32>, vector<32x128xf32>, vector<2x128xf32> -> vector<2x128xf32>
    %cst_67 = arith.constant dense<0.000000e+00> : vector<2x128xf32>
    %208 = tpu.matmul %200, %10, %cst_67 {dimension_numbers = #tpu.dot_dimension_numbers<[1], [0], [0], [1], [0, 0, 1, 1], [], []>} : vector<2x32xf32>, vector<32x128xf32>, vector<2x128xf32> -> vector<2x128xf32>
    %209 = arith.addf %207, %208 : vector<2x128xf32>
    %210 = arith.addf %209, %13 : vector<2x128xf32>
    %211 = math.tanh %210 : vector<2x128xf32>
    %212 = arith.negf %210 : vector<2x128xf32>
    %213 = math.exp %212 : vector<2x128xf32>
    %cst_68 = arith.constant 1.000000e+00 : f32
    %214 = vector.broadcast %cst_68 : f32 to vector<2x128xf32>
    %215 = arith.addf %214, %213 : vector<2x128xf32>
    %216 = arith.divf %214, %215 : vector<2x128xf32>
    %217 = arith.select %19, %211, %216 : vector<2x128xi1>, vector<2x128xf32>
    %218 = vector.extract_strided_slice %217 {offsets = [0, 0], sizes = [2, 32], strides = [1, 1]} : vector<2x128xf32> to vector<2x32xf32>
    %219 = vector.extract_strided_slice %217 {offsets = [0, 32], sizes = [2, 32], strides = [1, 1]} : vector<2x128xf32> to vector<2x32xf32>
    %220 = vector.extract_strided_slice %217 {offsets = [0, 64], sizes = [2, 32], strides = [1, 1]} : vector<2x128xf32> to vector<2x32xf32>
    %221 = vector.extract_strided_slice %217 {offsets = [0, 96], sizes = [2, 32], strides = [1, 1]} : vector<2x128xf32> to vector<2x32xf32>
    %222 = arith.mulf %219, %198 : vector<2x32xf32>
    %223 = arith.mulf %218, %220 : vector<2x32xf32>
    %224 = arith.addf %222, %223 : vector<2x32xf32>
    %225 = math.tanh %224 : vector<2x32xf32>
    %226 = arith.mulf %221, %225 : vector<2x32xf32>
    %c2_i32_69 = arith.constant 2 : i32
    %227 = arith.muli %c7_i32, %c2_i32_69 : i32
    %228 = arith.index_cast %227 : i32 to index
    %c0_70 = arith.constant 0 : index
    %229 = vector.load %arg15[%228, %c0_70] : memref<16x32xf32, #tpu.memory_space<vmem>>, vector<2x32xf32>
    tpu.vector_store %arg15[%228, %c0_70], %226 {strides = array<i32>} : memref<16x32xf32, #tpu.memory_space<vmem>>, vector<2x32xf32>,
    %c8_i32 = arith.constant 8 : i32
    %c0_71 = arith.constant 0 : index
    %c0_72 = arith.constant 0 : index
    %230 = vector.load %arg12[%c0_71, %c0_72] : memref<2x32xf32, #tpu.memory_space<vmem>>, vector<2x32xf32>
    tpu.vector_store %arg12[%c0_71, %c0_72], %226 {strides = array<i32>} : memref<2x32xf32, #tpu.memory_space<vmem>>, vector<2x32xf32>,
    %c0_73 = arith.constant 0 : index
    %c0_74 = arith.constant 0 : index
    %231 = vector.load %arg13[%c0_73, %c0_74] : memref<2x32xf32, #tpu.memory_space<vmem>>, vector<2x32xf32>
    tpu.vector_store %arg13[%c0_73, %c0_74], %224 {strides = array<i32>} : memref<2x32xf32, #tpu.memory_space<vmem>>, vector<2x32xf32>,
    %c0_75 = arith.constant 0 : index
    %c0_76 = arith.constant 0 : index
    %232 = vector.load %arg15[%c0_75, %c0_76] : memref<16x32xf32, #tpu.memory_space<vmem>>, vector<16x32xf32>
    %c0_77 = arith.constant 0 : index
    %c0_78 = arith.constant 0 : index
    %233 = vector.load %arg9[%c0_77, %c0_78] : memref<32x16xf32, #tpu.memory_space<vmem>>, vector<32x16xf32>
    %cst_79 = arith.constant dense<0.000000e+00> : vector<16x16xf32>
    %234 = tpu.matmul %232, %233, %cst_79 {dimension_numbers = #tpu.dot_dimension_numbers<[1], [0], [0], [1], [0, 0, 1, 1], [], []>} : vector<16x32xf32>, vector<32x16xf32>, vector<16x16xf32> -> vector<16x16xf32>
    %c0_80 = arith.constant 0 : index
    %c0_81 = arith.constant 0 : index
    %235 = vector.load %arg10[%c0_80, %c0_81] : memref<1x16xf32, #tpu.memory_space<vmem>>, vector<1x16xf32>
    %236 = vector.broadcast %235 : vector<1x16xf32> to vector<16x16xf32>
    %237 = arith.addf %234, %236 : vector<16x16xf32>
    %c0_82 = arith.constant 0 : index
    %c0_83 = arith.constant 0 : index
    %238 = vector.load %arg2[%c0_82, %c0_83] : memref<16x16xf32, #tpu.memory_space<vmem>>, vector<16x16xf32>
    %cst_84 = arith.constant dense<0.000000e+00> : vector<16x16xf32>
    %239 = tpu.matmul %238, %237, %cst_84 {dimension_numbers = #tpu.dot_dimension_numbers<[1], [0], [0], [1], [0, 0, 1, 1], [], []>} : vector<16x16xf32>, vector<16x16xf32>, vector<16x16xf32> -> vector<16x16xf32>
    %c0_85 = arith.constant 0 : index
    %c0_86 = arith.constant 0 : index
    %240 = vector.load %arg11[%c0_85, %c0_86] : memref<16x16xf32, #tpu.memory_space<vmem>>, vector<16x16xf32>
    tpu.vector_store %arg11[%c0_85, %c0_86], %239 {strides = array<i32>} : memref<16x16xf32, #tpu.memory_space<vmem>>, vector<16x16xf32>,
    return
  }
  func.func @transform_0(%arg0: i32) -> (i32, i32) {
    %c0_i32 = arith.constant 0 : i32
    %c0_i32_0 = arith.constant 0 : i32
    %c0_i32_1 = arith.constant 0 : i32
    return %c0_i32, %c0_i32_0 : i32, i32
  }
  func.func @transform_1(%arg0: i32) -> (i32, i32) {
    %c0_i32 = arith.constant 0 : i32
    %c0_i32_0 = arith.constant 0 : i32
    %c0_i32_1 = arith.constant 0 : i32
    return %c0_i32, %c0_i32_0 : i32, i32
  }
  func.func @transform_2(%arg0: i32) -> (i32, i32) {
    %c0_i32 = arith.constant 0 : i32
    %c0_i32_0 = arith.constant 0 : i32
    %c0_i32_1 = arith.constant 0 : i32
    return %c0_i32, %c0_i32_0 : i32, i32
  }
  func.func @transform_3(%arg0: i32) -> (i32, i32) {
    %c0_i32 = arith.constant 0 : i32
    %c0_i32_0 = arith.constant 0 : i32
    %c0_i32_1 = arith.constant 0 : i32
    return %c0_i32, %c0_i32_0 : i32, i32
  }
  func.func @transform_4(%arg0: i32) -> (i32, i32) {
    %c0_i32 = arith.constant 0 : i32
    %c0_i32_0 = arith.constant 0 : i32
    %c0_i32_1 = arith.constant 0 : i32
    return %c0_i32, %c0_i32_0 : i32, i32
  }
  func.func @transform_5(%arg0: i32) -> (i32, i32) {
    %c0_i32 = arith.constant 0 : i32
    %c0_i32_0 = arith.constant 0 : i32
    %c0_i32_1 = arith.constant 0 : i32
    return %c0_i32, %c0_i32_0 : i32, i32
  }
  func.func @transform_6(%arg0: i32) -> (i32, i32) {
    %c0_i32 = arith.constant 0 : i32
    %c0_i32_0 = arith.constant 0 : i32
    %c0_i32_1 = arith.constant 0 : i32
    return %c0_i32, %c0_i32_0 : i32, i32
  }
  func.func @transform_7(%arg0: i32) -> (i32, i32) {
    %c0_i32 = arith.constant 0 : i32
    %c0_i32_0 = arith.constant 0 : i32
    %c0_i32_1 = arith.constant 0 : i32
    return %c0_i32, %c0_i32_0 : i32, i32
  }
  func.func @transform_8(%arg0: i32) -> (i32, i32) {
    %c0_i32 = arith.constant 0 : i32
    %c0_i32_0 = arith.constant 0 : i32
    %c0_i32_1 = arith.constant 0 : i32
    return %c0_i32, %c0_i32_0 : i32, i32
  }
  func.func @transform_9(%arg0: i32) -> (i32, i32) {
    %c0_i32 = arith.constant 0 : i32
    %c0_i32_0 = arith.constant 0 : i32
    %c0_i32_1 = arith.constant 0 : i32
    return %c0_i32, %c0_i32_0 : i32, i32
  }
  func.func @transform_10(%arg0: i32) -> (i32, i32) {
    %c0_i32 = arith.constant 0 : i32
    %c0_i32_0 = arith.constant 0 : i32
    %c0_i32_1 = arith.constant 0 : i32
    return %c0_i32, %c0_i32_0 : i32, i32
  }
  func.func @transform_11(%arg0: i32) -> (i32, i32) {
    %c0_i32 = arith.constant 0 : i32
    %c0_i32_0 = arith.constant 0 : i32
    %c0_i32_1 = arith.constant 0 : i32
    return %c0_i32, %c0_i32_0 : i32, i32
  }
  func.func @transform_12(%arg0: i32) -> (i32, i32) {
    %c0_i32 = arith.constant 0 : i32
    %c0_i32_0 = arith.constant 0 : i32
    %c0_i32_1 = arith.constant 0 : i32
    return %c0_i32, %c0_i32_0 : i32, i32
  }
}

</mosaic_0001>

<llo_original>
// kernel: tpu_custom_call.1
$region0: #{tpu_custom_call.1}
  #allocation0 [shape = 'u32[]', space=smem, size = 0x4, offset = 0x4, fixed_abs, tag = 'smem constant byte address 0x4 - core index']
  #allocation1 [shape = 'u32[72,128]{1,0:T(1,128)}', space=vmem, size = 0x9000, scoped, tag = 'internal scratch']
  #allocation2 [shape = 'f32[16,32]{1,0:T(8,128)}', space=vmem, size = 0x2000, scoped, tag = 'scratch operand']
  #allocation3 [shape = 'f32[16,32]{1,0:T(8,128)}', space=vmem, size = 0x2000, scoped, tag = 'scratch operand']
  %s0 = inlined_call_operand.vmem [shape: s32[16,1], index: 0, kind: input, shape index: {}]
  %s1 = inlined_call_operand.vmem [shape: f32[16,16], index: 1, kind: input, shape index: {}]
  %s2 = inlined_call_operand.hbm [shape: f32[16,32], index: 2, kind: input, shape index: {}]
  %s3 = inlined_call_operand.vmem [shape: f32[2,32], index: 3, kind: input, shape index: {}]
  %s4 = inlined_call_operand.vmem [shape: f32[2,32], index: 4, kind: input, shape index: {}]
  %s5 = inlined_call_operand.vmem [shape: f32[32,128], index: 5, kind: input, shape index: {}]
  %s6 = inlined_call_operand.hbm [shape: f32[32,128], index: 6, kind: input, shape index: {}]
  %s7 = inlined_call_operand.vmem [shape: f32[1,128], index: 7, kind: input, shape index: {}]
  %s8 = inlined_call_operand.vmem [shape: f32[32,16], index: 8, kind: input, shape index: {}]
  %s9 = inlined_call_operand.vmem [shape: f32[1,16], index: 9, kind: input, shape index: {}]
  %s10 = inlined_call_operand.hbm [shape: f32[16,16], index: 10, kind: output, shape index: {0}]
  %s11 = inlined_call_operand.hbm [shape: f32[2,32], index: 11, kind: output, shape index: {1}]
  %s12 = inlined_call_operand.hbm [shape: f32[2,32], index: 12, kind: output, shape index: {2}]
  %13 = xla_tuple %s10, %s11, %s12
  %s14 = sld [smem:[#allocation0]]
  $region74: #{tpu_custom_call.1} parent=0
    _
  %s16 = ssub.s32 1, %s14
  %s17 = scalar_select 0, %s16, %s14
  $region1: #{tpu_custom_call.1} parent=0
    #allocation4 [shape = 'u8[8192]{0}', space=vmem, size = 0x2000, scoped, tag = 'input window, operand 2, single buffered']
    #allocation5 [shape = 's32[1]{0}', space=sflag, size = 0x4, scoped, tag = 'scoped memory for tpu_custom_call.1']
    #allocation6 [shape = 's32[1]{0}', space=sflag, size = 0x4, scoped, tag = 'scoped memory for tpu_custom_call.1']
    #allocation7 [shape = 'u8[16384]{0}', space=vmem, size = 0x4000, scoped, tag = 'input window, operand 6, single buffered']
    #allocation8 [shape = 's32[1]{0}', space=sflag, size = 0x4, scoped, tag = 'scoped memory for tpu_custom_call.1']
    #allocation9 [shape = 'u8[8192]{0}', space=vmem, size = 0x2000, scoped, tag = 'output window, operand 0, single buffered']
    #allocation10 [shape = 'u8[1024]{0}', space=vmem, size = 0x400, scoped, tag = 'output window, operand 1, single buffered']
    #allocation11 [shape = 's32[1]{0}', space=sflag, size = 0x4, scoped, tag = 'scoped memory for tpu_custom_call.1']
    #allocation12 [shape = 'u8[1024]{0}', space=vmem, size = 0x400, scoped, tag = 'output window, operand 2, single buffered']
    %18 = vsyncpa [#allocation5], 0
    %19 = vsyncpa [#allocation8], 0
    %20 = vsyncpa [#allocation6], 0
    %21 = vsyncpa [#allocation11], 0
    // Predicated region
    $region2: #{tpu_custom_call.1} parent=1 // pred_check
      _
    $region3: #{tpu_custom_call.1} parent=1 // pred_check_branch
      %23 = sbr.rel (0) target = $region5
    $region4: #{tpu_custom_call.1} parent=1 // pred_region
      _
    $region5: #{tpu_custom_call.1} parent=1 // pred_fallthru
      _
    // Predicated region
    $region6: #{tpu_custom_call.1} parent=1 // pred_check
      _
    $region7: #{tpu_custom_call.1} parent=1 // pred_check_branch
      %25 = sbr.rel (0) target = $region9
    $region8: #{tpu_custom_call.1} parent=1 // pred_region
      _
    $region9: #{tpu_custom_call.1} parent=1 // pred_fallthru
      _
    // Predicated region
    $region10: #{tpu_custom_call.1} parent=1 // pred_check
      _
    $region11: #{tpu_custom_call.1} parent=1 // pred_check_branch
      %27 = sbr.rel (0) target = $region13
    $region12: #{tpu_custom_call.1} parent=1 // pred_region
      %29 = vsyncadd [#allocation5], 0
      %s30 = sshll.u32 %s2, 4
      %s31 = int_to_ptr.hbm [resolvable:$true] %s30
      %s32 = sshll.u32 [#allocation4], 4
      %s33 = int_to_ptr.vmem [resolvable:$true] %s32
      %38 = dma.hbm_to_vmem [thread:$0]  %s31, 256, %s33, [#allocation5], 128, 128, 8
    $region13: #{tpu_custom_call.1} parent=1 // pred_fallthru
      _
    // Predicated region
    $region14: #{tpu_custom_call.1} parent=1 // pred_check
      _
    $region15: #{tpu_custom_call.1} parent=1 // pred_check_branch
      %40 = sbr.rel (0) target = $region17
    $region16: #{tpu_custom_call.1} parent=1 // pred_region
      _
    $region17: #{tpu_custom_call.1} parent=1 // pred_fallthru
      _
    // Predicated region
    $region18: #{tpu_custom_call.1} parent=1 // pred_check
      _
    $region19: #{tpu_custom_call.1} parent=1 // pred_check_branch
      %42 = sbr.rel (0) target = $region21
    $region20: #{tpu_custom_call.1} parent=1 // pred_region
      _
    $region21: #{tpu_custom_call.1} parent=1 // pred_fallthru
      _
    // Predicated region
    $region22: #{tpu_custom_call.1} parent=1 // pred_check
      _
    $region23: #{tpu_custom_call.1} parent=1 // pred_check_branch
      %44 = sbr.rel (0) target = $region25
    $region24: #{tpu_custom_call.1} parent=1 // pred_region
      _
    $region25: #{tpu_custom_call.1} parent=1 // pred_fallthru
      _
    // Predicated region
    $region26: #{tpu_custom_call.1} parent=1 // pred_check
      _
    $region27: #{tpu_custom_call.1} parent=1 // pred_check_branch
      %46 = sbr.rel (0) target = $region29
    $region28: #{tpu_custom_call.1} parent=1 // pred_region
      %48 = vsyncadd [#allocation8], 0
      %s49 = sshll.u32 %s6, 4
      %s50 = int_to_ptr.hbm [resolvable:$true] %s49
      %s51 = sshll.u32 [#allocation7], 4
      %s52 = int_to_ptr.vmem [resolvable:$true] %s51
      %57 = dma.hbm_to_vmem [thread:$0]  %s50, 512, %s52, [#allocation8], 128, 128, 8
    $region29: #{tpu_custom_call.1} parent=1 // pred_fallthru
      _
    // Predicated region
    $region30: #{tpu_custom_call.1} parent=1 // pred_check
      _
    $region31: #{tpu_custom_call.1} parent=1 // pred_check_branch
      %59 = sbr.rel (0) target = $region33
    $region32: #{tpu_custom_call.1} parent=1 // pred_region
      _
    $region33: #{tpu_custom_call.1} parent=1 // pred_fallthru
      _
    // Predicated region
    $region34: #{tpu_custom_call.1} parent=1 // pred_check
      _
    $region35: #{tpu_custom_call.1} parent=1 // pred_check_branch
      %61 = sbr.rel (0) target = $region37
    $region36: #{tpu_custom_call.1} parent=1 // pred_region
      _
    $region37: #{tpu_custom_call.1} parent=1 // pred_fallthru
      _
    // Predicated region
    $region38: #{tpu_custom_call.1} parent=1 // pred_check
      _
    $region39: #{tpu_custom_call.1} parent=1 // pred_check_branch
      %63 = sbr.rel (0) target = $region41
    $region40: #{tpu_custom_call.1} parent=1 // pred_region
      _
    $region41: #{tpu_custom_call.1} parent=1 // pred_fallthru
      _
    // Predicated region
    $region42: #{tpu_custom_call.1} parent=1 // pred_check
      _
    $region43: #{tpu_custom_call.1} parent=1 // pred_check_branch
      %65 = sbr.rel (0) target = $region45
    $region44: #{tpu_custom_call.1} parent=1 // pred_region
      %67 = dma.done [#allocation5], 256
    $region45: #{tpu_custom_call.1} parent=1 // pred_fallthru
      _
    // Predicated region
    $region46: #{tpu_custom_call.1} parent=1 // pred_check
      _
    $region47: #{tpu_custom_call.1} parent=1 // pred_check_branch
      %69 = sbr.rel (0) target = $region49
    $region48: #{tpu_custom_call.1} parent=1 // pred_region
      %71 = dma.done [#allocation8], 512
    $region49: #{tpu_custom_call.1} parent=1 // pred_fallthru
      _
    %v72 = vld [vmem:[%s0] sm:$0xff]
    %v73 = vld [vmem:[%s0 + $0x8] sm:$0xff]
    %v74 = vlaneseq
    %v75 = vand.u32 %v74, 127
    %76 = vset.pattern.permute.xlu0 0
    %77 = vperm.xlu0 %76, %v72
    %v78 = vpop.permute.xlu0 %77
    %79 = vset.pattern.permute.xlu0 0
    %80 = vperm.xlu0 %79, %v73
    %v81 = vpop.permute.xlu0 %80
    %vm82 = vcmp.eq.s32.totalorder %v78, %v75
    %vm83 = vcmp.eq.s32.totalorder %v81, %v75
    %v84 = vsel %vm82, 1, 0
    %v85 = vsel %vm83, 1, 0
    %v86 = vcvt.s32.f32 %v84
    %v87 = vcvt.s32.f32 %v85
    %v88 = vld [vmem:[#allocation4] sm:$0xff]
    %v89 = vld [vmem:[#allocation4 + $0x8] sm:$0xff]
    %vm90 = vcmask 130048
    %v92 = vsel %vm90, %v86, 0
    %v95 = vsel %vm90, %v87, 0
    %97 = vmatpush.msra.mxu0 0.0
    %98 = vmatpush.msra.mxu0 0.0
    %99 = vmatpush.msra.mxu0 0.0
    %100 = vmatpush.msra.mxu0 0.0
    %101 = vmatpush.msra.mxu0 0.0
    %102 = vmatpush.msra.mxu0 0.0
    %103 = vmatpush.msra.mxu0 0.0
    %104 = vmatpush.msra.mxu0 0.0
    %105 = vmatpush.msra.mxu0 0.0
    %106 = vmatpush.msra.mxu0 0.0
    %107 = vmatpush.msra.mxu0 0.0
    %108 = vmatpush.msra.mxu0 0.0
    %109 = vmatpush.msra.mxu0 0.0
    %110 = vmatpush.msra.mxu0 0.0
    %111 = vmatpush.msra.mxu0 %v89
    %112 = vmatpush.msra.mxu0 %v88
    %113 = vmatmul.f32.gmra.mxu0 %v92
    %v114 = vpop.f32.mrf.mxu0
    %v115 = vadd.f32 0.0, %v114
    %116 = vmatmul.f32.gmra.mxu0 %v95
    %v117 = vpop.f32.mrf.mxu0
    %v118 = vadd.f32 0.0, %v117
    %119 = vdwg.mxu0
    %vm120 = vcmask 261120
    %121 = vst.msk [vmem:[#allocation2] sm:$0xff] %vm120, %v115
    %122 = vst.msk [vmem:[#allocation2 + $0x8] sm:$0xff] %vm120, %v118
    %v123 = vld [vmem:[%s5] sm:$0xff]
    %v124 = vld [vmem:[%s5 + $0x8] sm:$0xff]
    %v125 = vld [vmem:[%s5 + $0x10] sm:$0xff]
    %v126 = vld [vmem:[%s5 + $0x18] sm:$0xff]
    %v127 = vld [vmem:[#allocation7] sm:$0xff]
    %v128 = vld [vmem:[#allocation7 + $0x8] sm:$0xff]
    %v129 = vld [vmem:[#allocation7 + $0x10] sm:$0xff]
    %v130 = vld [vmem:[#allocation7 + $0x18] sm:$0xff]
    %v131 = vld [vmem:[%s7] sm:$0x1]
    %v133 = vperm.slane %v131, 0
    %vm135 = vcmp.ge.s32.totalorder %v75, 64
    %vm136 = vcmp.lt.s32.totalorder %v75, 96
    %vm137 = vmand %vm135, %vm136
    %v138 = vld [vmem:[%s3] sm:$0x3]
    %v139 = vld [vmem:[%s4] sm:$0x3]
    %v140 = vld [vmem:[#allocation2] sm:$0x3]
    %v142 = vsel %vm120, %v138, 0
    %144 = vmatpush.msra.mxu0 0.0
    %145 = vmatpush.msra.mxu0 0.0
    %146 = vmatpush.msra.mxu0 0.0
    %147 = vmatpush.msra.mxu0 0.0
    %148 = vmatpush.msra.mxu0 0.0
    %149 = vmatpush.msra.mxu0 0.0
    %150 = vmatpush.msra.mxu0 0.0
    %151 = vmatpush.msra.mxu0 0.0
    %152 = vmatpush.msra.mxu0 0.0
    %153 = vmatpush.msra.mxu0 0.0
    %154 = vmatpush.msra.mxu0 0.0
    %155 = vmatpush.msra.mxu0 0.0
    %156 = vmatpush.msra.mxu0 %v130
    %157 = vmatpush.msra.mxu0 %v129
    %158 = vmatpush.msra.mxu0 %v128
    %159 = vmatpush.msra.mxu0 %v127
    %160 = vmatmul.f32.gmra.mxu0 %v142
    %v161 = vpop.f32.mrf.mxu0
    %v162 = vadd.f32 0.0, %v161
    %163 = vdwg.mxu0
    %v165 = vsel %vm120, %v140, 0
    %167 = vmatpush.msra.mxu0 0.0
    %168 = vmatpush.msra.mxu0 0.0
    %169 = vmatpush.msra.mxu0 0.0
    %170 = vmatpush.msra.mxu0 0.0
    %171 = vmatpush.msra.mxu0 0.0
    %172 = vmatpush.msra.mxu0 0.0
    %173 = vmatpush.msra.mxu0 0.0
    %174 = vmatpush.msra.mxu0 0.0
    %175 = vmatpush.msra.mxu0 0.0
    %176 = vmatpush.msra.mxu0 0.0
    %177 = vmatpush.msra.mxu0 0.0
    %178 = vmatpush.msra.mxu0 0.0
    %179 = vmatpush.msra.mxu0 %v126
    %180 = vmatpush.msra.mxu0 %v125
    %181 = vmatpush.msra.mxu0 %v124
    %182 = vmatpush.msra.mxu0 %v123
    %183 = vmatmul.f32.gmra.mxu0 %v165
    %v184 = vpop.f32.mrf.mxu0
    %v185 = vadd.f32 %v162, %v184
    %186 = vdwg.mxu0
    %v187 = vadd.f32 %v185, %v133
    %v188 = vtanh.pop %v187
    %v189 = vxor.u32 %v187, 2147483648
    %v190 = vmul.f32 %v189, 1.442695
    %v191 = vpow.pop %v190
    %v192 = vadd.f32 %v191, 1.0
    %v193 = vrcp.pop %v192
    %v194 = vmul.f32 %v192, %v193
    %v195 = vsub.f32 1.0, %v194
    %v196 = vmul.f32 %v193, %v195
    %v197 = vadd.f32 %v193, %v196
    %vm198 = vweird.f32 %v192
    %vm199 = vweird.f32 %v193
    %vm200 = vmor %vm198, %vm199
    %v201 = vsel %vm200, %v193, %v197
    %v202 = vand.u32 2147483647, %v192
    %vm203 = vcmp.eq.f32.partialorder %v202, 8.507059e+37
    %v204 = vand.u32 %v192, 2147483648
    %v205 = vor.u32 1.1754944e-38, %v204
    %v206 = vsel %vm203, %v205, %v201
    %v207 = vmul.f32 1.0, %v206
    %v208 = vsel %vm137, %v188, %v207
    %210 = vrot.lane.b32.xlu0 %v139, 32
    %v211 = vpop.permute.xlu0 %210
    %v213 = vmul.f32 %v208, %v211
    %215 = vrot.lane.b32.xlu0 %v208, 64
    %v216 = vpop.permute.xlu0 %215
    %v218 = vmul.f32 %v208, %v216
    %220 = vrot.lane.b32.xlu0 %v218, 32
    %v221 = vpop.permute.xlu0 %220
    %v223 = vadd.f32 %v213, %v221
    %v224 = vtanh.pop %v223
    %226 = vrot.lane.b32.xlu0 %v224, 64
    %v227 = vpop.permute.xlu0 %226
    %v229 = vmul.f32 %v208, %v227
    %231 = vrot.lane.b32.xlu0 %v229, 32
    %v232 = vpop.permute.xlu0 %231
    %vm234 = vcmask 254976
    %235 = vst.msk [vmem:[#allocation3] sm:$0x3] %vm234, %v232
    %v236 = vld [vmem:[#allocation2 + $0x2] sm:$0x3]
    %v237 = vsel %vm120, %v232, 0
    %239 = vmatpush.msra.mxu0 0.0
    %240 = vmatpush.msra.mxu0 0.0
    %241 = vmatpush.msra.mxu0 0.0
    %242 = vmatpush.msra.mxu0 0.0
    %243 = vmatpush.msra.mxu0 0.0
    %244 = vmatpush.msra.mxu0 0.0
    %245 = vmatpush.msra.mxu0 0.0
    %246 = vmatpush.msra.mxu0 0.0
    %247 = vmatpush.msra.mxu0 0.0
    %248 = vmatpush.msra.mxu0 0.0
    %249 = vmatpush.msra.mxu0 0.0
    %250 = vmatpush.msra.mxu0 0.0
    %251 = vmatpush.msra.mxu0 %v130
    %252 = vmatpush.msra.mxu0 %v129
    %253 = vmatpush.msra.mxu0 %v128
    %254 = vmatpush.msra.mxu0 %v127
    %255 = vmatmul.f32.gmra.mxu0 %v237
    %v256 = vpop.f32.mrf.mxu0
    %v257 = vadd.f32 0.0, %v256
    %258 = vdwg.mxu0
    %v260 = vsel %vm120, %v236, 0
    %262 = vmatpush.msra.mxu0 0.0
    %263 = vmatpush.msra.mxu0 0.0
    %264 = vmatpush.msra.mxu0 0.0
    %265 = vmatpush.msra.mxu0 0.0
    %266 = vmatpush.msra.mxu0 0.0
    %267 = vmatpush.msra.mxu0 0.0
    %268 = vmatpush.msra.mxu0 0.0
    %269 = vmatpush.msra.mxu0 0.0
    %270 = vmatpush.msra.mxu0 0.0
    %271 = vmatpush.msra.mxu0 0.0
    %272 = vmatpush.msra.mxu0 0.0
    %273 = vmatpush.msra.mxu0 0.0
    %274 = vmatpush.msra.mxu0 %v126
    %275 = vmatpush.msra.mxu0 %v125
    %276 = vmatpush.msra.mxu0 %v124
    %277 = vmatpush.msra.mxu0 %v123
    %278 = vmatmul.f32.gmra.mxu0 %v260
    %v279 = vpop.f32.mrf.mxu0
    %v280 = vadd.f32 %v257, %v279
    %281 = vdwg.mxu0
    %v282 = vadd.f32 %v280, %v133
    %v283 = vtanh.pop %v282
    %v284 = vxor.u32 %v282, 2147483648
    %v285 = vmul.f32 %v284, 1.442695
    %v286 = vpow.pop %v285
    %v287 = vadd.f32 %v286, 1.0
    %v288 = vrcp.pop %v287
    %v289 = vmul.f32 %v287, %v288
    %v290 = vsub.f32 1.0, %v289
    %v291 = vmul.f32 %v288, %v290
    %v292 = vadd.f32 %v288, %v291
    %vm293 = vweird.f32 %v287
    %vm294 = vweird.f32 %v288
    %vm295 = vmor %vm293, %vm294
    %v296 = vsel %vm295, %v288, %v292
    %v297 = vand.u32 2147483647, %v287
    %vm298 = vcmp.eq.f32.partialorder %v297, 8.507059e+37
    %v299 = vand.u32 %v287, 2147483648
    %v300 = vor.u32 1.1754944e-38, %v299
    %v301 = vsel %vm298, %v300, %v296
    %v302 = vmul.f32 1.0, %v301
    %v303 = vsel %vm137, %v283, %v302
    %v304 = vmul.f32 %v303, %v223
    %306 = vrot.lane.b32.xlu0 %v303, 64
    %v307 = vpop.permute.xlu0 %306
    %v309 = vmul.f32 %v303, %v307
    %311 = vrot.lane.b32.xlu0 %v309, 32
    %v312 = vpop.permute.xlu0 %311
    %v314 = vadd.f32 %v304, %v312
    %v315 = vtanh.pop %v314
    %317 = vrot.lane.b32.xlu0 %v315, 64
    %v318 = vpop.permute.xlu0 %317
    %v320 = vmul.f32 %v303, %v318
    %322 = vrot.lane.b32.xlu0 %v320, 32
    %v323 = vpop.permute.xlu0 %322
    %325 = vst.msk [vmem:[#allocation3 + $0x2] sm:$0x3] %vm234, %v323
    %v326 = vld [vmem:[#allocation2 + $0x4] sm:$0x3]
    %v327 = vsel %vm120, %v323, 0
    %329 = vmatpush.msra.mxu0 0.0
    %330 = vmatpush.msra.mxu0 0.0
    %331 = vmatpush.msra.mxu0 0.0
    %332 = vmatpush.msra.mxu0 0.0
    %333 = vmatpush.msra.mxu0 0.0
    %334 = vmatpush.msra.mxu0 0.0
    %335 = vmatpush.msra.mxu0 0.0
    %336 = vmatpush.msra.mxu0 0.0
    %337 = vmatpush.msra.mxu0 0.0
    %338 = vmatpush.msra.mxu0 0.0
    %339 = vmatpush.msra.mxu0 0.0
    %340 = vmatpush.msra.mxu0 0.0
    %341 = vmatpush.msra.mxu0 %v130
    %342 = vmatpush.msra.mxu0 %v129
    %343 = vmatpush.msra.mxu0 %v128
    %344 = vmatpush.msra.mxu0 %v127
    %345 = vmatmul.f32.gmra.mxu0 %v327
    %v346 = vpop.f32.mrf.mxu0
    %v347 = vadd.f32 0.0, %v346
    %348 = vdwg.mxu0
    %v350 = vsel %vm120, %v326, 0
    %352 = vmatpush.msra.mxu0 0.0
    %353 = vmatpush.msra.mxu0 0.0
    %354 = vmatpush.msra.mxu0 0.0
    %355 = vmatpush.msra.mxu0 0.0
    %356 = vmatpush.msra.mxu0 0.0
    %357 = vmatpush.msra.mxu0 0.0
    %358 = vmatpush.msra.mxu0 0.0
    %359 = vmatpush.msra.mxu0 0.0
    %360 = vmatpush.msra.mxu0 0.0
    %361 = vmatpush.msra.mxu0 0.0
    %362 = vmatpush.msra.mxu0 0.0
    %363 = vmatpush.msra.mxu0 0.0
    %364 = vmatpush.msra.mxu0 %v126
    %365 = vmatpush.msra.mxu0 %v125
    %366 = vmatpush.msra.mxu0 %v124
    %367 = vmatpush.msra.mxu0 %v123
    %368 = vmatmul.f32.gmra.mxu0 %v350
    %v369 = vpop.f32.mrf.mxu0
    %v370 = vadd.f32 %v347, %v369
    %371 = vdwg.mxu0
    %v372 = vadd.f32 %v370, %v133
    %v373 = vtanh.pop %v372
    %v374 = vxor.u32 %v372, 2147483648
    %v375 = vmul.f32 %v374, 1.442695
    %v376 = vpow.pop %v375
    %v377 = vadd.f32 %v376, 1.0
    %v378 = vrcp.pop %v377
    %v379 = vmul.f32 %v377, %v378
    %v380 = vsub.f32 1.0, %v379
    %v381 = vmul.f32 %v378, %v380
    %v382 = vadd.f32 %v378, %v381
    %vm383 = vweird.f32 %v377
    %vm384 = vweird.f32 %v378
    %vm385 = vmor %vm383, %vm384
    %v386 = vsel %vm385, %v378, %v382
    %v387 = vand.u32 2147483647, %v377
    %vm388 = vcmp.eq.f32.partialorder %v387, 8.507059e+37
    %v389 = vand.u32 %v377, 2147483648
    %v390 = vor.u32 1.1754944e-38, %v389
    %v391 = vsel %vm388, %v390, %v386
    %v392 = vmul.f32 1.0, %v391
    %v393 = vsel %vm137, %v373, %v392
    %v394 = vmul.f32 %v393, %v314
    %396 = vrot.lane.b32.xlu0 %v393, 64
    %v397 = vpop.permute.xlu0 %396
    %v399 = vmul.f32 %v393, %v397
    %401 = vrot.lane.b32.xlu0 %v399, 32
    %v402 = vpop.permute.xlu0 %401
    %v404 = vadd.f32 %v394, %v402
    %v405 = vtanh.pop %v404
    %407 = vrot.lane.b32.xlu0 %v405, 64
    %v408 = vpop.permute.xlu0 %407
    %v410 = vmul.f32 %v393, %v408
    %412 = vrot.lane.b32.xlu0 %v410, 32
    %v413 = vpop.permute.xlu0 %412
    %415 = vst.msk [vmem:[#allocation3 + $0x4] sm:$0x3] %vm234, %v413
    %v416 = vld [vmem:[#allocation2 + $0x6] sm:$0x3]
    %v417 = vsel %vm120, %v413, 0
    %419 = vmatpush.msra.mxu0 0.0
    %420 = vmatpush.msra.mxu0 0.0
    %421 = vmatpush.msra.mxu0 0.0
    %422 = vmatpush.msra.mxu0 0.0
    %423 = vmatpush.msra.mxu0 0.0
    %424 = vmatpush.msra.mxu0 0.0
    %425 = vmatpush.msra.mxu0 0.0
    %426 = vmatpush.msra.mxu0 0.0
    %427 = vmatpush.msra.mxu0 0.0
    %428 = vmatpush.msra.mxu0 0.0
    %429 = vmatpush.msra.mxu0 0.0
    %430 = vmatpush.msra.mxu0 0.0
    %431 = vmatpush.msra.mxu0 %v130
    %432 = vmatpush.msra.mxu0 %v129
    %433 = vmatpush.msra.mxu0 %v128
    %434 = vmatpush.msra.mxu0 %v127
    %435 = vmatmul.f32.gmra.mxu0 %v417
    %v436 = vpop.f32.mrf.mxu0
    %v437 = vadd.f32 0.0, %v436
    %438 = vdwg.mxu0
    %v440 = vsel %vm120, %v416, 0
    %442 = vmatpush.msra.mxu0 0.0
    %443 = vmatpush.msra.mxu0 0.0
    %444 = vmatpush.msra.mxu0 0.0
    %445 = vmatpush.msra.mxu0 0.0
    %446 = vmatpush.msra.mxu0 0.0
    %447 = vmatpush.msra.mxu0 0.0
    %448 = vmatpush.msra.mxu0 0.0
    %449 = vmatpush.msra.mxu0 0.0
    %450 = vmatpush.msra.mxu0 0.0
    %451 = vmatpush.msra.mxu0 0.0
    %452 = vmatpush.msra.mxu0 0.0
    %453 = vmatpush.msra.mxu0 0.0
    %454 = vmatpush.msra.mxu0 %v126
    %455 = vmatpush.msra.mxu0 %v125
    %456 = vmatpush.msra.mxu0 %v124
    %457 = vmatpush.msra.mxu0 %v123
    %458 = vmatmul.f32.gmra.mxu0 %v440
    %v459 = vpop.f32.mrf.mxu0
    %v460 = vadd.f32 %v437, %v459
    %461 = vdwg.mxu0
    %v462 = vadd.f32 %v460, %v133
    %v463 = vtanh.pop %v462
    %v464 = vxor.u32 %v462, 2147483648
    %v465 = vmul.f32 %v464, 1.442695
    %v466 = vpow.pop %v465
    %v467 = vadd.f32 %v466, 1.0
    %v468 = vrcp.pop %v467
    %v469 = vmul.f32 %v467, %v468
    %v470 = vsub.f32 1.0, %v469
    %v471 = vmul.f32 %v468, %v470
    %v472 = vadd.f32 %v468, %v471
    %vm473 = vweird.f32 %v467
    %vm474 = vweird.f32 %v468
    %vm475 = vmor %vm473, %vm474
    %v476 = vsel %vm475, %v468, %v472
    %v477 = vand.u32 2147483647, %v467
    %vm478 = vcmp.eq.f32.partialorder %v477, 8.507059e+37
    %v479 = vand.u32 %v467, 2147483648
    %v480 = vor.u32 1.1754944e-38, %v479
    %v481 = vsel %vm478, %v480, %v476
    %v482 = vmul.f32 1.0, %v481
    %v483 = vsel %vm137, %v463, %v482
    %v484 = vmul.f32 %v483, %v404
    %486 = vrot.lane.b32.xlu0 %v483, 64
    %v487 = vpop.permute.xlu0 %486
    %v489 = vmul.f32 %v483, %v487
    %491 = vrot.lane.b32.xlu0 %v489, 32
    %v492 = vpop.permute.xlu0 %491
    %v494 = vadd.f32 %v484, %v492
    %v495 = vtanh.pop %v494
    %497 = vrot.lane.b32.xlu0 %v495, 64
    %v498 = vpop.permute.xlu0 %497
    %v500 = vmul.f32 %v483, %v498
    %502 = vrot.lane.b32.xlu0 %v500, 32
    %v503 = vpop.permute.xlu0 %502
    %505 = vst.msk [vmem:[#allocation3 + $0x6] sm:$0x3] %vm234, %v503
    %v506 = vld [vmem:[#allocation2 + $0x8] sm:$0x3]
    %v507 = vsel %vm120, %v503, 0
    %509 = vmatpush.msra.mxu0 0.0
    %510 = vmatpush.msra.mxu0 0.0
    %511 = vmatpush.msra.mxu0 0.0
    %512 = vmatpush.msra.mxu0 0.0
    %513 = vmatpush.msra.mxu0 0.0
    %514 = vmatpush.msra.mxu0 0.0
    %515 = vmatpush.msra.mxu0 0.0
    %516 = vmatpush.msra.mxu0 0.0
    %517 = vmatpush.msra.mxu0 0.0
    %518 = vmatpush.msra.mxu0 0.0
    %519 = vmatpush.msra.mxu0 0.0
    %520 = vmatpush.msra.mxu0 0.0
    %521 = vmatpush.msra.mxu0 %v130
    %522 = vmatpush.msra.mxu0 %v129
    %523 = vmatpush.msra.mxu0 %v128
    %524 = vmatpush.msra.mxu0 %v127
    %525 = vmatmul.f32.gmra.mxu0 %v507
    %v526 = vpop.f32.mrf.mxu0
    %v527 = vadd.f32 0.0, %v526
    %528 = vdwg.mxu0
    %v530 = vsel %vm120, %v506, 0
    %532 = vmatpush.msra.mxu0 0.0
    %533 = vmatpush.msra.mxu0 0.0
    %534 = vmatpush.msra.mxu0 0.0
    %535 = vmatpush.msra.mxu0 0.0
    %536 = vmatpush.msra.mxu0 0.0
    %537 = vmatpush.msra.mxu0 0.0
    %538 = vmatpush.msra.mxu0 0.0
    %539 = vmatpush.msra.mxu0 0.0
    %540 = vmatpush.msra.mxu0 0.0
    %541 = vmatpush.msra.mxu0 0.0
    %542 = vmatpush.msra.mxu0 0.0
    %543 = vmatpush.msra.mxu0 0.0
    %544 = vmatpush.msra.mxu0 %v126
    %545 = vmatpush.msra.mxu0 %v125
    %546 = vmatpush.msra.mxu0 %v124
    %547 = vmatpush.msra.mxu0 %v123
    %548 = vmatmul.f32.gmra.mxu0 %v530
    %v549 = vpop.f32.mrf.mxu0
    %v550 = vadd.f32 %v527, %v549
    %551 = vdwg.mxu0
    %v552 = vadd.f32 %v550, %v133
    %v553 = vtanh.pop %v552
    %v554 = vxor.u32 %v552, 2147483648
    %v555 = vmul.f32 %v554, 1.442695
    %v556 = vpow.pop %v555
    %v557 = vadd.f32 %v556, 1.0
    %v558 = vrcp.pop %v557
    %v559 = vmul.f32 %v557, %v558
    %v560 = vsub.f32 1.0, %v559
    %v561 = vmul.f32 %v558, %v560
    %v562 = vadd.f32 %v558, %v561
    %vm563 = vweird.f32 %v557
    %vm564 = vweird.f32 %v558
    %vm565 = vmor %vm563, %vm564
    %v566 = vsel %vm565, %v558, %v562
    %v567 = vand.u32 2147483647, %v557
    %vm568 = vcmp.eq.f32.partialorder %v567, 8.507059e+37
    %v569 = vand.u32 %v557, 2147483648
    %v570 = vor.u32 1.1754944e-38, %v569
    %v571 = vsel %vm568, %v570, %v566
    %v572 = vmul.f32 1.0, %v571
    %v573 = vsel %vm137, %v553, %v572
    %v574 = vmul.f32 %v573, %v494
    %576 = vrot.lane.b32.xlu0 %v573, 64
    %v577 = vpop.permute.xlu0 %576
    %v579 = vmul.f32 %v573, %v577
    %581 = vrot.lane.b32.xlu0 %v579, 32
    %v582 = vpop.permute.xlu0 %581
    %v584 = vadd.f32 %v574, %v582
    %v585 = vtanh.pop %v584
    %587 = vrot.lane.b32.xlu0 %v585, 64
    %v588 = vpop.permute.xlu0 %587
    %v590 = vmul.f32 %v573, %v588
    %592 = vrot.lane.b32.xlu0 %v590, 32
    %v593 = vpop.permute.xlu0 %592
    %595 = vst.msk [vmem:[#allocation3 + $0x8] sm:$0x3] %vm234, %v593
    %v596 = vld [vmem:[#allocation2 + $0xa] sm:$0x3]
    %v597 = vsel %vm120, %v593, 0
    %599 = vmatpush.msra.mxu0 0.0
    %600 = vmatpush.msra.mxu0 0.0
    %601 = vmatpush.msra.mxu0 0.0
    %602 = vmatpush.msra.mxu0 0.0
    %603 = vmatpush.msra.mxu0 0.0
    %604 = vmatpush.msra.mxu0 0.0
    %605 = vmatpush.msra.mxu0 0.0
    %606 = vmatpush.msra.mxu0 0.0
    %607 = vmatpush.msra.mxu0 0.0
    %608 = vmatpush.msra.mxu0 0.0
    %609 = vmatpush.msra.mxu0 0.0
    %610 = vmatpush.msra.mxu0 0.0
    %611 = vmatpush.msra.mxu0 %v130
    %612 = vmatpush.msra.mxu0 %v129
    %613 = vmatpush.msra.mxu0 %v128
    %614 = vmatpush.msra.mxu0 %v127
    %615 = vmatmul.f32.gmra.mxu0 %v597
    %v616 = vpop.f32.mrf.mxu0
    %v617 = vadd.f32 0.0, %v616
    %618 = vdwg.mxu0
    %v620 = vsel %vm120, %v596, 0
    %622 = vmatpush.msra.mxu0 0.0
    %623 = vmatpush.msra.mxu0 0.0
    %624 = vmatpush.msra.mxu0 0.0
    %625 = vmatpush.msra.mxu0 0.0
    %626 = vmatpush.msra.mxu0 0.0
    %627 = vmatpush.msra.mxu0 0.0
    %628 = vmatpush.msra.mxu0 0.0
    %629 = vmatpush.msra.mxu0 0.0
    %630 = vmatpush.msra.mxu0 0.0
    %631 = vmatpush.msra.mxu0 0.0
    %632 = vmatpush.msra.mxu0 0.0
    %633 = vmatpush.msra.mxu0 0.0
    %634 = vmatpush.msra.mxu0 %v126
    %635 = vmatpush.msra.mxu0 %v125
    %636 = vmatpush.msra.mxu0 %v124
    %637 = vmatpush.msra.mxu0 %v123
    %638 = vmatmul.f32.gmra.mxu0 %v620
    %v639 = vpop.f32.mrf.mxu0
    %v640 = vadd.f32 %v617, %v639
    %641 = vdwg.mxu0
    %v642 = vadd.f32 %v640, %v133
    %v643 = vtanh.pop %v642
    %v644 = vxor.u32 %v642, 2147483648
    %v645 = vmul.f32 %v644, 1.442695
    %v646 = vpow.pop %v645
    %v647 = vadd.f32 %v646, 1.0
    %v648 = vrcp.pop %v647
    %v649 = vmul.f32 %v647, %v648
    %v650 = vsub.f32 1.0, %v649
    %v651 = vmul.f32 %v648, %v650
    %v652 = vadd.f32 %v648, %v651
    %vm653 = vweird.f32 %v647
    %vm654 = vweird.f32 %v648
    %vm655 = vmor %vm653, %vm654
    %v656 = vsel %vm655, %v648, %v652
    %v657 = vand.u32 2147483647, %v647
    %vm658 = vcmp.eq.f32.partialorder %v657, 8.507059e+37
    %v659 = vand.u32 %v647, 2147483648
    %v660 = vor.u32 1.1754944e-38, %v659
    %v661 = vsel %vm658, %v660, %v656
    %v662 = vmul.f32 1.0, %v661
    %v663 = vsel %vm137, %v643, %v662
    %v664 = vmul.f32 %v663, %v584
    %666 = vrot.lane.b32.xlu0 %v663, 64
    %v667 = vpop.permute.xlu0 %666
    %v669 = vmul.f32 %v663, %v667
    %671 = vrot.lane.b32.xlu0 %v669, 32
    %v672 = vpop.permute.xlu0 %671
    %v674 = vadd.f32 %v664, %v672
    %v675 = vtanh.pop %v674
    %677 = vrot.lane.b32.xlu0 %v675, 64
    %v678 = vpop.permute.xlu0 %677
    %v680 = vmul.f32 %v663, %v678
    %682 = vrot.lane.b32.xlu0 %v680, 32
    %v683 = vpop.permute.xlu0 %682
    %685 = vst.msk [vmem:[#allocation3 + $0xa] sm:$0x3] %vm234, %v683
    %v686 = vld [vmem:[#allocation2 + $0xc] sm:$0x3]
    %v687 = vsel %vm120, %v683, 0
    %689 = vmatpush.msra.mxu0 0.0
    %690 = vmatpush.msra.mxu0 0.0
    %691 = vmatpush.msra.mxu0 0.0
    %692 = vmatpush.msra.mxu0 0.0
    %693 = vmatpush.msra.mxu0 0.0
    %694 = vmatpush.msra.mxu0 0.0
    %695 = vmatpush.msra.mxu0 0.0
    %696 = vmatpush.msra.mxu0 0.0
    %697 = vmatpush.msra.mxu0 0.0
    %698 = vmatpush.msra.mxu0 0.0
    %699 = vmatpush.msra.mxu0 0.0
    %700 = vmatpush.msra.mxu0 0.0
    %701 = vmatpush.msra.mxu0 %v130
    %702 = vmatpush.msra.mxu0 %v129
    %703 = vmatpush.msra.mxu0 %v128
    %704 = vmatpush.msra.mxu0 %v127
    %705 = vmatmul.f32.gmra.mxu0 %v687
    %v706 = vpop.f32.mrf.mxu0
    %v707 = vadd.f32 0.0, %v706
    %708 = vdwg.mxu0
    %v710 = vsel %vm120, %v686, 0
    %712 = vmatpush.msra.mxu0 0.0
    %713 = vmatpush.msra.mxu0 0.0
    %714 = vmatpush.msra.mxu0 0.0
    %715 = vmatpush.msra.mxu0 0.0
    %716 = vmatpush.msra.mxu0 0.0
    %717 = vmatpush.msra.mxu0 0.0
    %718 = vmatpush.msra.mxu0 0.0
    %719 = vmatpush.msra.mxu0 0.0
    %720 = vmatpush.msra.mxu0 0.0
    %721 = vmatpush.msra.mxu0 0.0
    %722 = vmatpush.msra.mxu0 0.0
    %723 = vmatpush.msra.mxu0 0.0
    %724 = vmatpush.msra.mxu0 %v126
    %725 = vmatpush.msra.mxu0 %v125
    %726 = vmatpush.msra.mxu0 %v124
    %727 = vmatpush.msra.mxu0 %v123
    %728 = vmatmul.f32.gmra.mxu0 %v710
    %v729 = vpop.f32.mrf.mxu0
    %v730 = vadd.f32 %v707, %v729
    %731 = vdwg.mxu0
    %v732 = vadd.f32 %v730, %v133
    %v733 = vtanh.pop %v732
    %v734 = vxor.u32 %v732, 2147483648
    %v735 = vmul.f32 %v734, 1.442695
    %v736 = vpow.pop %v735
    %v737 = vadd.f32 %v736, 1.0
    %v738 = vrcp.pop %v737
    %v739 = vmul.f32 %v737, %v738
    %v740 = vsub.f32 1.0, %v739
    %v741 = vmul.f32 %v738, %v740
    %v742 = vadd.f32 %v738, %v741
    %vm743 = vweird.f32 %v737
    %vm744 = vweird.f32 %v738
    %vm745 = vmor %vm743, %vm744
    %v746 = vsel %vm745, %v738, %v742
    %v747 = vand.u32 2147483647, %v737
    %vm748 = vcmp.eq.f32.partialorder %v747, 8.507059e+37
    %v749 = vand.u32 %v737, 2147483648
    %v750 = vor.u32 1.1754944e-38, %v749
    %v751 = vsel %vm748, %v750, %v746
    %v752 = vmul.f32 1.0, %v751
    %v753 = vsel %vm137, %v733, %v752
    %v754 = vmul.f32 %v753, %v674
    %756 = vrot.lane.b32.xlu0 %v753, 64
    %v757 = vpop.permute.xlu0 %756
    %v759 = vmul.f32 %v753, %v757
    %761 = vrot.lane.b32.xlu0 %v759, 32
    %v762 = vpop.permute.xlu0 %761
    %v764 = vadd.f32 %v754, %v762
    %v765 = vtanh.pop %v764
    %767 = vrot.lane.b32.xlu0 %v765, 64
    %v768 = vpop.permute.xlu0 %767
    %v770 = vmul.f32 %v753, %v768
    %772 = vrot.lane.b32.xlu0 %v770, 32
    %v773 = vpop.permute.xlu0 %772
    %775 = vst.msk [vmem:[#allocation3 + $0xc] sm:$0x3] %vm234, %v773
    %v776 = vld [vmem:[#allocation2 + $0xe] sm:$0x3]
    %v777 = vsel %vm120, %v773, 0
    %779 = vmatpush.msra.mxu0 0.0
    %780 = vmatpush.msra.mxu0 0.0
    %781 = vmatpush.msra.mxu0 0.0
    %782 = vmatpush.msra.mxu0 0.0
    %783 = vmatpush.msra.mxu0 0.0
    %784 = vmatpush.msra.mxu0 0.0
    %785 = vmatpush.msra.mxu0 0.0
    %786 = vmatpush.msra.mxu0 0.0
    %787 = vmatpush.msra.mxu0 0.0
    %788 = vmatpush.msra.mxu0 0.0
    %789 = vmatpush.msra.mxu0 0.0
    %790 = vmatpush.msra.mxu0 0.0
    %791 = vmatpush.msra.mxu0 %v130
    %792 = vmatpush.msra.mxu0 %v129
    %793 = vmatpush.msra.mxu0 %v128
    %794 = vmatpush.msra.mxu0 %v127
    %795 = vmatmul.f32.gmra.mxu0 %v777
    %v796 = vpop.f32.mrf.mxu0
    %v797 = vadd.f32 0.0, %v796
    %798 = vdwg.mxu0
    %v800 = vsel %vm120, %v776, 0
    %802 = vmatpush.msra.mxu0 0.0
    %803 = vmatpush.msra.mxu0 0.0
    %804 = vmatpush.msra.mxu0 0.0
    %805 = vmatpush.msra.mxu0 0.0
    %806 = vmatpush.msra.mxu0 0.0
    %807 = vmatpush.msra.mxu0 0.0
    %808 = vmatpush.msra.mxu0 0.0
    %809 = vmatpush.msra.mxu0 0.0
    %810 = vmatpush.msra.mxu0 0.0
    %811 = vmatpush.msra.mxu0 0.0
    %812 = vmatpush.msra.mxu0 0.0
    %813 = vmatpush.msra.mxu0 0.0
    %814 = vmatpush.msra.mxu0 %v126
    %815 = vmatpush.msra.mxu0 %v125
    %816 = vmatpush.msra.mxu0 %v124
    %817 = vmatpush.msra.mxu0 %v123
    %818 = vmatmul.f32.gmra.mxu0 %v800
    %v819 = vpop.f32.mrf.mxu0
    %v820 = vadd.f32 %v797, %v819
    %821 = vdwg.mxu0
    %v822 = vadd.f32 %v820, %v133
    %v823 = vtanh.pop %v822
    %v824 = vxor.u32 %v822, 2147483648
    %v825 = vmul.f32 %v824, 1.442695
    %v826 = vpow.pop %v825
    %v827 = vadd.f32 %v826, 1.0
    %v828 = vrcp.pop %v827
    %v829 = vmul.f32 %v827, %v828
    %v830 = vsub.f32 1.0, %v829
    %v831 = vmul.f32 %v828, %v830
    %v832 = vadd.f32 %v828, %v831
    %vm833 = vweird.f32 %v827
    %vm834 = vweird.f32 %v828
    %vm835 = vmor %vm833, %vm834
    %v836 = vsel %vm835, %v828, %v832
    %v837 = vand.u32 2147483647, %v827
    %vm838 = vcmp.eq.f32.partialorder %v837, 8.507059e+37
    %v839 = vand.u32 %v827, 2147483648
    %v840 = vor.u32 1.1754944e-38, %v839
    %v841 = vsel %vm838, %v840, %v836
    %v842 = vmul.f32 1.0, %v841
    %v843 = vsel %vm137, %v823, %v842
    %v844 = vmul.f32 %v843, %v764
    %846 = vrot.lane.b32.xlu0 %v843, 64
    %v847 = vpop.permute.xlu0 %846
    %v849 = vmul.f32 %v843, %v847
    %851 = vrot.lane.b32.xlu0 %v849, 32
    %v852 = vpop.permute.xlu0 %851
    %v854 = vadd.f32 %v844, %v852
    %v855 = vtanh.pop %v854
    %857 = vrot.lane.b32.xlu0 %v855, 64
    %v858 = vpop.permute.xlu0 %857
    %v860 = vmul.f32 %v843, %v858
    %862 = vrot.lane.b32.xlu0 %v860, 32
    %v863 = vpop.permute.xlu0 %862
    %865 = vst.msk [vmem:[#allocation3 + $0xe] sm:$0x3] %vm234, %v863
    %866 = vst.msk [vmem:[#allocation10] sm:$0x3] %vm234, %v863
    %868 = vrot.lane.b32.xlu0 %v854, 96
    %v869 = vpop.permute.xlu0 %868
    %871 = vst.msk [vmem:[#allocation12] sm:$0x3] %vm234, %v869
    %v872 = vld [vmem:[#allocation3] sm:$0xff]
    %v873 = vld [vmem:[#allocation3 + $0x8] sm:$0xff]
    %v874 = vld [vmem:[%s8] sm:$0xff]
    %v875 = vld [vmem:[%s8 + $0x8] sm:$0xff]
    %v876 = vld [vmem:[%s8 + $0x10] sm:$0xff]
    %v877 = vld [vmem:[%s8 + $0x18] sm:$0xff]
    %v878 = vld [vmem:[%s9] sm:$0x1]
    %v880 = vperm.slane %v878, 0
    %v883 = vsel %vm120, %v872, 0
    %v886 = vsel %vm120, %v873, 0
    %888 = vmatpush.msra.mxu0 0.0
    %889 = vmatpush.msra.mxu0 0.0
    %890 = vmatpush.msra.mxu0 0.0
    %891 = vmatpush.msra.mxu0 0.0
    %892 = vmatpush.msra.mxu0 0.0
    %893 = vmatpush.msra.mxu0 0.0
    %894 = vmatpush.msra.mxu0 0.0
    %895 = vmatpush.msra.mxu0 0.0
    %896 = vmatpush.msra.mxu0 0.0
    %897 = vmatpush.msra.mxu0 0.0
    %898 = vmatpush.msra.mxu0 0.0
    %899 = vmatpush.msra.mxu0 0.0
    %900 = vmatpush.msra.mxu0 %v877
    %901 = vmatpush.msra.mxu0 %v876
    %902 = vmatpush.msra.mxu0 %v875
    %903 = vmatpush.msra.mxu0 %v874
    %904 = vmatmul.f32.gmra.mxu0 %v883
    %v905 = vpop.f32.mrf.mxu0
    %v906 = vadd.f32 %v880, %v905
    %907 = vmatmul.f32.gmra.mxu0 %v886
    %v908 = vpop.f32.mrf.mxu0
    %v909 = vadd.f32 %v880, %v908
    %910 = vdwg.mxu0
    %v911 = vld [vmem:[%s1] sm:$0xff]
    %v912 = vld [vmem:[%s1 + $0x8] sm:$0xff]
    %v914 = vsel %vm90, %v911, 0
    %v917 = vsel %vm90, %v912, 0
    %919 = vmatpush.msra.mxu0 0.0
    %920 = vmatpush.msra.mxu0 0.0
    %921 = vmatpush.msra.mxu0 0.0
    %922 = vmatpush.msra.mxu0 0.0
    %923 = vmatpush.msra.mxu0 0.0
    %924 = vmatpush.msra.mxu0 0.0
    %925 = vmatpush.msra.mxu0 0.0
    %926 = vmatpush.msra.mxu0 0.0
    %927 = vmatpush.msra.mxu0 0.0
    %928 = vmatpush.msra.mxu0 0.0
    %929 = vmatpush.msra.mxu0 0.0
    %930 = vmatpush.msra.mxu0 0.0
    %931 = vmatpush.msra.mxu0 0.0
    %932 = vmatpush.msra.mxu0 0.0
    %933 = vmatpush.msra.mxu0 %v909
    %934 = vmatpush.msra.mxu0 %v906
    %935 = vmatmul.f32.gmra.mxu0 %v914
    %v936 = vpop.f32.mrf.mxu0
    %v937 = vadd.f32 0.0, %v936
    %938 = vmatmul.f32.gmra.mxu0 %v917
    %v939 = vpop.f32.mrf.mxu0
    %v940 = vadd.f32 0.0, %v939
    %941 = vdwg.mxu0
    %942 = vst.msk [vmem:[#allocation9] sm:$0xff] %vm90, %v937
    %943 = vst.msk [vmem:[#allocation9 + $0x8] sm:$0xff] %vm90, %v940
    // Predicated region
    $region50: #{tpu_custom_call.1} parent=1 // pred_check
      _
    $region51: #{tpu_custom_call.1} parent=1 // pred_check_branch
      %945 = sbr.rel (0) target = $region53
    $region52: #{tpu_custom_call.1} parent=1 // pred_region
      %947 = vsyncadd [#allocation6], 0
      %s948 = sshll.u32 [#allocation9], 4
      %s949 = int_to_ptr.vmem [resolvable:$true] %s948
      %s950 = sshll.u32 %s10, 4
      %s951 = int_to_ptr.hbm [resolvable:$true] %s950
      %956 = dma.vmem_to_hbm [thread:$0]  %s949, 256, %s951, [#allocation6], 128, 128, 8
    $region53: #{tpu_custom_call.1} parent=1 // pred_fallthru
      _
    // Predicated region
    $region54: #{tpu_custom_call.1} parent=1 // pred_check
      _
    $region55: #{tpu_custom_call.1} parent=1 // pred_check_branch
      %958 = sbr.rel (0) target = $region57
    $region56: #{tpu_custom_call.1} parent=1 // pred_region
      %960 = vsyncadd [#allocation11], 0
      %s962 = sshll.u32 [#allocation10], 4
      %s963 = int_to_ptr.vmem [resolvable:$true] %s962
      %s964 = sshll.u32 %s11, 4
      %s965 = int_to_ptr.hbm [resolvable:$true] %s964
      %967 = dma.vmem_to_hbm [thread:$0]  %s963, 32, %s965, [#allocation11]
    $region57: #{tpu_custom_call.1} parent=1 // pred_fallthru
      _
    // Predicated region
    $region58: #{tpu_custom_call.1} parent=1 // pred_check
      _
    $region59: #{tpu_custom_call.1} parent=1 // pred_check_branch
      %969 = sbr.rel (0) target = $region61
    $region60: #{tpu_custom_call.1} parent=1 // pred_region
      %971 = vsyncadd [#allocation11], 0
      %s973 = sshll.u32 [#allocation12], 4
      %s974 = int_to_ptr.vmem [resolvable:$true] %s973
      %s975 = sshll.u32 %s12, 4
      %s976 = int_to_ptr.hbm [resolvable:$true] %s975
      %978 = dma.vmem_to_hbm [thread:$0]  %s974, 32, %s976, [#allocation11]
    $region61: #{tpu_custom_call.1} parent=1 // pred_fallthru
      _
    // Predicated region
    $region62: #{tpu_custom_call.1} parent=1 // pred_check
      _
    $region63: #{tpu_custom_call.1} parent=1 // pred_check_branch
      %980 = sbr.rel (0) target = $region65
    $region64: #{tpu_custom_call.1} parent=1 // pred_region
      %982 = dma.done [#allocation6], 256
    $region65: #{tpu_custom_call.1} parent=1 // pred_fallthru
      _
    // Predicated region
    $region66: #{tpu_custom_call.1} parent=1 // pred_check
      _
    $region67: #{tpu_custom_call.1} parent=1 // pred_check_branch
      %984 = sbr.rel (0) target = $region69
    $region68: #{tpu_custom_call.1} parent=1 // pred_region
      %986 = dma.done [#allocation11], 32
    $region69: #{tpu_custom_call.1} parent=1 // pred_fallthru
      _
    // Predicated region
    $region70: #{tpu_custom_call.1} parent=1 // pred_check
      _
    $region71: #{tpu_custom_call.1} parent=1 // pred_check_branch
      %988 = sbr.rel (0) target = $region73
    $region72: #{tpu_custom_call.1} parent=1 // pred_region
      %990 = dma.done [#allocation11], 32
    $region73: #{tpu_custom_call.1} parent=1 // pred_fallthru
      _
    %991 = vsyncpa [#allocation5], 1
    %992 = vsyncpa [#allocation8], 1
    %993 = vsyncpa [#allocation6], 1
    %994 = vsyncpa [#allocation11], 1

</llo_original>
